<compile_context>
chip_gen: v5e
topology: v5e:2x2
jax: 0.10.0
libtpu: 0.0.40
codegen_flags: <defaults>
</compile_context>

<pallas_src>
import functools
import math

import jax
import jax.numpy as jnp
from jax.experimental import pallas as pl
from jax.experimental.pallas import tpu as pltpu

LN_EPS = 1e-5  # PyTorch nn.LayerNorm default


def _layernorm(x, w, b):
    # biased variance, eps=1e-5 -> matches PyTorch nn.LayerNorm
    mean = jnp.mean(x, axis=-1, keepdims=True)
    var = jnp.mean((x - mean) ** 2, axis=-1, keepdims=True)
    return (x - mean) * jax.lax.rsqrt(var + LN_EPS) * w + b


def _erf(x):
    # Abramowitz & Stegun 7.1.26 polynomial erf (|err| <= 1.5e-7), built only
    # from exp / abs / where / mul-add so it is guaranteed to lower on Mosaic.
    # Keeps the exact-erf GELU semantics of nn.GELU (default approximate='none').
    a1, a2, a3, a4, a5 = (0.254829592, -0.284496736, 1.421413741,
                          -1.453152027, 1.061405429)
    p = 0.3275911
    ax = jnp.abs(x)
    t = 1.0 / (1.0 + p * ax)
    poly = ((((a5 * t + a4) * t + a3) * t + a2) * t + a1) * t
    y = 1.0 - poly * jnp.exp(-ax * ax)
    return jnp.where(x >= 0, y, -y)


def _gelu_exact(x):
    return 0.5 * x * (1.0 + _erf(x * (2.0 ** -0.5)))


# --------------------------- fused decoder kernel ---------------------------
def decoder_kernel(num_heads,
                   x_ref, ln1w_ref, ln1b_ref, wqkv_ref, wproj_ref, bproj_ref,
                   ln2w_ref, ln2b_ref, wfc1_ref, bfc1_ref, wfc2_ref, bfc2_ref,
                   fnw_ref, fnb_ref, o_ref, xs_ref):
    """grid = (batch_blocks, depth); one transformer block per (b, d) step.

    xs_ref (VMEM scratch) holds the residual stream for the current batch
    block, resident across the whole depth axis.
    """
    d = pl.program_id(1)

    # NOTE: input_output_aliases={0: 0} is only safe because x_ref is read
    # exclusively at d == 0 (copied into the VMEM scratch before the aliased
    # output block could ever be written) and the out BlockSpec returns the
    # same block index as the input for each batch block.
    @pl.when(d == 0)
    def _():
        xs_ref[...] = x_ref[...]

    Bt, N, C = xs_ref.shape
    H = num_heads
    hd = C // H
    M = Bt * N

    x2 = xs_ref[...].reshape(M, C)                       # (M, C) f32 residual

    # ---------------- Attention branch ----------------
    y = _layernorm(x2, ln1w_ref[0, 0], ln1b_ref[0, 0])
    # One lane-dense QKV matmul; attention scale already folded into q columns
    # of the packed weight.  Cast the result to bf16 once, slice afterwards.
    qkv = jnp.dot(y.astype(jnp.bfloat16), wqkv_ref[0],
                  preferred_element_type=jnp.float32)    # (M, 3C) f32
    qkv = qkv.astype(jnp.bfloat16)

    ctx_parts = []
    for h in range(H):                                   # static unroll over heads
        q_h = qkv[:, h * hd:(h + 1) * hd].reshape(Bt, N, hd)
        k_h = qkv[:, C + h * hd:C + (h + 1) * hd].reshape(Bt, N, hd)
        v_h = qkv[:, 2 * C + h * hd:2 * C + (h + 1) * hd].reshape(Bt, N, hd)
        s = jnp.einsum('bnd,bmd->bnm', q_h, k_h,
                       preferred_element_type=jnp.float32)       # (Bt, N, N)
        s = s - jnp.max(s, axis=-1, keepdims=True)
        p = jnp.exp(s)
        p = p * pl.reciprocal(jnp.sum(p, axis=-1, keepdims=True), approx=True)
        c = jnp.einsum('bnm,bmd->bnd', p.astype(jnp.bfloat16), v_h,
                       preferred_element_type=jnp.float32)       # (Bt, N, hd)
        ctx_parts.append(c.astype(jnp.bfloat16).reshape(M, hd))
    # Heads concatenated along channels == torch (attn @ v).transpose(1,2).reshape
    ctx = jnp.concatenate(ctx_parts, axis=-1)            # (M, C) bf16

    # Single full-K output projection (no (H,N,C) intermediate / H-way sum).
    proj = jnp.dot(ctx, wproj_ref[0], preferred_element_type=jnp.float32)
    x2 = x2 + proj + bproj_ref[0, 0]

    # ---------------- MLP branch ----------------
    y = _layernorm(x2, ln2w_ref[0, 0], ln2b_ref[0, 0])
    hid = jnp.dot(y.astype(jnp.bfloat16), wfc1_ref[0],
                  preferred_element_type=jnp.float32) + bfc1_ref[0, 0]
    hid = _gelu_exact(hid)                               # exact erf GELU
    mlp = jnp.dot(hid.astype(jnp.bfloat16), wfc2_ref[0],
                  preferred_element_type=jnp.float32) + bfc2_ref[0, 0]
    x2 = x2 + mlp

    xs_ref[...] = x2.reshape(Bt, N, C)

    @pl.when(d == pl.num_programs(1) - 1)
    def _():
        o_ref[...] = _layernorm(x2, fnw_ref[0], fnb_ref[0]).reshape(Bt, N, C)


def transformer_decoder(x, packed, num_heads, batch_block=None):
    B, N, C = x.shape
    depth = packed['ln1_w'].shape[0]
    Hm = packed['wfc1'].shape[2]
    # Bt = B maximizes weight-DMA amortization (right for 1-TC v5e/v6e).
    # On v7x (2 TCs) pass batch_block = B // 2 to keep both cores busy.
    Bt = B if batch_block is None else batch_block
    assert B % Bt == 0 and C % num_heads == 0

    def dspec(shape):                    # per-layer (depth-stacked) params
        nd = len(shape) - 1
        return pl.BlockSpec((1,) + tuple(shape[1:]),
                            lambda b, d, _nd=nd: (d,) + (0,) * _nd)

    def cspec(shape):                    # shared (final-norm) params
        nd = len(shape)
        return pl.BlockSpec(tuple(shape), lambda b, d, _nd=nd: (0,) * _nd)

    # Scoped-VMEM budget: double-buffered per-layer bf16 weights + f32
    # activation / score working set + headroom.  The 16/32 MiB defaults break
    # the intended layer-(k+1) weight prefetch at realistic embed dims.
    w_layer = 2 * (3 * C * C + C * C + 2 * C * Hm)       # bf16 bytes per layer
    act = 4 * Bt * N * (6 * C + 2 * Hm) + 8 * Bt * N * N
    vmem_limit = int(min(100 << 20, max(32 << 20, 2 * w_layer + act + (8 << 20))))
    # TODO(synk): on v7x (64 MiB VMEM) with C >= ~1024 or N >= ~512, split each
    # layer into two weight-streaming phases (attn / MLP) and flash-tile the
    # key axis with an online softmax instead of the full (N, N) score matrix.

    in_specs = [
        pl.BlockSpec((Bt, N, C), lambda b, d: (b, 0, 0)),          # x
        dspec(packed['ln1_w'].shape), dspec(packed['ln1_b'].shape),
        dspec(packed['wqkv'].shape), dspec(packed['wproj'].shape),
        dspec(packed['bproj'].shape),
        dspec(packed['ln2_w'].shape), dspec(packed['ln2_b'].shape),
        dspec(packed['wfc1'].shape), dspec(packed['bfc1'].shape),
        dspec(packed['wfc2'].shape), dspec(packed['bfc2'].shape),
        cspec(packed['fn_w'].shape), cspec(packed['fn_b'].shape),
    ]
    return pl.pallas_call(
        functools.partial(decoder_kernel, num_heads),
        out_shape=jax.ShapeDtypeStruct((B, N, C), jnp.float32),
        grid=(B // Bt, depth),
        in_specs=in_specs,
        out_specs=pl.BlockSpec((Bt, N, C), lambda b, d: (b, 0, 0)),
        scratch_shapes=[pltpu.VMEM((Bt, N, C), jnp.float32)],
        input_output_aliases={0: 0},
        compiler_params=pltpu.CompilerParams(
            dimension_semantics=("parallel", "arbitrary"),
            vmem_limit_bytes=vmem_limit),
    )(x, packed['ln1_w'], packed['ln1_b'], packed['wqkv'], packed['wproj'],
      packed['bproj'], packed['ln2_w'], packed['ln2_b'], packed['wfc1'],
      packed['bfc1'], packed['wfc2'], packed['bfc2'],
      packed['fn_w'], packed['fn_b'])


# --------------------- parameter init / packing (host side) -----------------
def _xavier(key, fan_in, fan_out):
    # stored (in, out) -- transposed vs. PyTorch nn.Linear's (out, in); a real
    # weight loader must transpose PyTorch weights before packing.
    bound = math.sqrt(6.0 / (fan_in + fan_out))
    return jax.random.uniform(key, (fan_in, fan_out), jnp.float32, -bound, bound)


def init_params(key, embed_dim, depth, mlp_ratio):
    hidden = int(embed_dim * mlp_ratio)
    blocks = []
    for _ in range(depth):
        key, k1, k2, k3, k4 = jax.random.split(key, 5)
        blocks.append({
            'ln1_w': jnp.ones((embed_dim,), jnp.float32),
            'ln1_b': jnp.zeros((embed_dim,), jnp.float32),
            'wqkv': _xavier(k1, embed_dim, 3 * embed_dim),   # qkv_bias=False
            'wproj': _xavier(k2, embed_dim, embed_dim),
            'bproj': jnp.zeros((embed_dim,), jnp.float32),
            'ln2_w': jnp.ones((embed_dim,), jnp.float32),
            'ln2_b': jnp.zeros((embed_dim,), jnp.float32),
            'wfc1': _xavier(k3, embed_dim, hidden),
            'bfc1': jnp.zeros((hidden,), jnp.float32),
            'wfc2': _xavier(k4, hidden, embed_dim),
            'bfc2': jnp.zeros((embed_dim,), jnp.float32),
        })
    fn_w = jnp.ones((embed_dim,), jnp.float32)
    fn_b = jnp.zeros((embed_dim,), jnp.float32)
    return blocks, fn_w, fn_b


def pack_params(blocks, fn_w, fn_b, num_heads):
    """Stack per-layer params over depth.  Matmul weights are kept lane-dense
    ((C,3C) / (C,C) / (C,4C) / (4C,C)) and cast to bf16 (f32 accumulation in
    the kernel).  The attention scale 1/sqrt(hd) is folded into the q columns
    of the QKV weight so the kernel does no N^2 scale multiply."""
    depth = len(blocks)
    C = blocks[0]['wqkv'].shape[0]
    Hm = blocks[0]['wfc1'].shape[1]
    scale = (C // num_heads) ** -0.5
    st = lambda k: jnp.stack([blk[k] for blk in blocks])
    bf16 = jnp.bfloat16
    wqkv = st('wqkv')                                   # (D, C, 3C), (in, out)
    wqkv = wqkv.at[:, :, :C].multiply(scale)            # fold scale into q
    return {
        'ln1_w': st('ln1_w').reshape(depth, 1, C),
        'ln1_b': st('ln1_b').reshape(depth, 1, C),
        'wqkv': wqkv.astype(bf16),
        'wproj': st('wproj').astype(bf16),              # (D, C, C)
        'bproj': st('bproj').reshape(depth, 1, C),
        'ln2_w': st('ln2_w').reshape(depth, 1, C),
        'ln2_b': st('ln2_b').reshape(depth, 1, C),
        'wfc1': st('wfc1').astype(bf16),
        'bfc1': st('bfc1').reshape(depth, 1, Hm),
        'wfc2': st('wfc2').astype(bf16),
        'bfc2': st('bfc2').reshape(depth, 1, C),
        'fn_w': fn_w.reshape(1, C),
        'fn_b': fn_b.reshape(1, C),
    }


# ----------------------- pure-JAX f32 reference ------------------------------
def reference_decoder(x, blocks, fn_w, fn_b, num_heads):
    B, N, C = x.shape
    H = num_heads
    hd = C // H
    scale = hd ** -0.5
    for p in blocks:
        y = _layernorm(x, p['ln1_w'], p['ln1_b'])
        qkv = (y @ p['wqkv']).reshape(B, N, 3, H, hd).transpose(2, 0, 3, 1, 4)
        q, k, v = qkv[0], qkv[1], qkv[2]                      # (B, H, N, hd)
        a = jax.nn.softmax(
            jnp.einsum('bhnd,bhmd->bhnm', q, k) * scale, axis=-1)
        o = jnp.einsum('bhnm,bhmd->bhnd', a, v).transpose(0, 2, 1, 3)
        x = x + o.reshape(B, N, C) @ p['wproj'] + p['bproj']
        y = _layernorm(x, p['ln2_w'], p['ln2_b'])
        h = jax.nn.gelu(y @ p['wfc1'] + p['bfc1'], approximate=False)
        x = x + h @ p['wfc2'] + p['bfc2']
    return _layernorm(x, fn_w, fn_b)


if __name__ == "__main__":
    # small shapes consistent with the module: B=2, N=8 tokens, embed_dim=32,
    # num_heads=4 (dim divisible by heads), depth=4, mlp_ratio=4 -> hidden=128
    B, N, C = 2, 8, 32
    num_heads, depth, mlp_ratio = 4, 4, 4.0

    key = jax.random.PRNGKey(0)
    key, kx, kp = jax.random.split(key, 3)
    x = jax.random.normal(kx, (B, N, C), jnp.float32)
    blocks, fn_w, fn_b = init_params(kp, C, depth, mlp_ratio)
    packed = pack_params(blocks, fn_w, fn_b, num_heads)

    run = jax.jit(functools.partial(transformer_decoder, num_heads=num_heads))
    out = run(x, packed)
    jax.block_until_ready(out)
    assert out.shape == (B, N, C)

    # Validate against the f32 reference.  Tolerance covers bf16 matmul
    # operands / bf16-packed weights and the approx softmax reciprocal; real
    # layout/scale bugs produce O(1) errors and would still trip this.
    ref = reference_decoder(x, blocks, fn_w, fn_b, num_heads)
    err = float(jnp.max(jnp.abs(out - ref)))
    assert err < 0.1, f"max abs err {err}"
    print("KERNEL_OK")
</pallas_src>

<mosaic_0001>
module attributes {stable_mosaic.version = 11 : i64} {
  func.func @decoder_kernel(%arg0: i32, %arg1: i32, %arg2: memref<2x8x32xf32, #tpu.memory_space<vmem>>, %arg3: memref<1x1x32xf32, #tpu.memory_space<vmem>>, %arg4: memref<1x1x32xf32, #tpu.memory_space<vmem>>, %arg5: memref<1x32x96xbf16, #tpu.memory_space<vmem>>, %arg6: memref<1x32x32xbf16, #tpu.memory_space<vmem>>, %arg7: memref<1x1x32xf32, #tpu.memory_space<vmem>>, %arg8: memref<1x1x32xf32, #tpu.memory_space<vmem>>, %arg9: memref<1x1x32xf32, #tpu.memory_space<vmem>>, %arg10: memref<1x32x128xbf16, #tpu.memory_space<vmem>>, %arg11: memref<1x1x128xf32, #tpu.memory_space<vmem>>, %arg12: memref<1x128x32xbf16, #tpu.memory_space<vmem>>, %arg13: memref<1x1x32xf32, #tpu.memory_space<vmem>>, %arg14: memref<1x32xf32, #tpu.memory_space<vmem>>, %arg15: memref<1x32xf32, #tpu.memory_space<vmem>>, %arg16: memref<2x8x32xf32, #tpu.memory_space<vmem>>, %arg17: memref<2x8x32xf32, #tpu.memory_space<vmem>>) attributes {dimension_semantics = [#tpu.dimension_semantics<parallel>, #tpu.dimension_semantics<arbitrary>], iteration_bounds = array<i64: 1, 4>, scalar_prefetch = 0 : i64, scratch_operands = 1 : i64, tpu.core_type = #tpu.core_type<tc>, window_params = [{transform_indices = @transform_0, window_bounds = array<i64: 2, 8, 32>}, {transform_indices = @transform_1, window_bounds = array<i64: 1, 1, 32>}, {transform_indices = @transform_2, window_bounds = array<i64: 1, 1, 32>}, {transform_indices = @transform_3, window_bounds = array<i64: 1, 32, 96>}, {transform_indices = @transform_4, window_bounds = array<i64: 1, 32, 32>}, {transform_indices = @transform_5, window_bounds = array<i64: 1, 1, 32>}, {transform_indices = @transform_6, window_bounds = array<i64: 1, 1, 32>}, {transform_indices = @transform_7, window_bounds = array<i64: 1, 1, 32>}, {transform_indices = @transform_8, window_bounds = array<i64: 1, 32, 128>}, {transform_indices = @transform_9, window_bounds = array<i64: 1, 1, 128>}, {transform_indices = @transform_10, window_bounds = array<i64: 1, 128, 32>}, {transform_indices = @transform_11, window_bounds = array<i64: 1, 1, 32>}, {pipeline_mode = #tpu.pipeline_mode<synchronous>, transform_indices = @transform_12, window_bounds = array<i64: 1, 32>}, {pipeline_mode = #tpu.pipeline_mode<synchronous>, transform_indices = @transform_13, window_bounds = array<i64: 1, 32>}, {transform_indices = @transform_14, window_bounds = array<i64: 2, 8, 32>}]} {
    %c0_i32 = arith.constant 0 : i32
    %0 = arith.cmpi eq, %arg1, %c0_i32 : i32
    %1 = arith.extui %0 : i1 to i32
    %c0_i32_0 = arith.constant 0 : i32
    %2 = arith.cmpi ne, %1, %c0_i32_0 : i32
    scf.if %2 {
      %c0_84 = arith.constant 0 : index
      %c0_85 = arith.constant 0 : index
      %c0_86 = arith.constant 0 : index
      %224 = vector.load %arg2[%c0_84, %c0_85, %c0_86] : memref<2x8x32xf32, #tpu.memory_space<vmem>>, vector<2x8x32xf32>
      %c0_87 = arith.constant 0 : index
      %c0_88 = arith.constant 0 : index
      %c0_89 = arith.constant 0 : index
      %225 = vector.load %arg17[%c0_87, %c0_88, %c0_89] : memref<2x8x32xf32, #tpu.memory_space<vmem>>, vector<2x8x32xf32>
      tpu.vector_store %arg17[%c0_87, %c0_88, %c0_89], %224 {strides = array<i32>} : memref<2x8x32xf32, #tpu.memory_space<vmem>>, vector<2x8x32xf32>,
    } else {
    }
    %c0 = arith.constant 0 : index
    %c0_1 = arith.constant 0 : index
    %c0_2 = arith.constant 0 : index
    %3 = vector.load %arg17[%c0, %c0_1, %c0_2] : memref<2x8x32xf32, #tpu.memory_space<vmem>>, vector<2x8x32xf32>
    %4 = vector.shape_cast %3 : vector<2x8x32xf32> to vector<16x32xf32>
    %c0_3 = arith.constant 0 : index
    %c0_4 = arith.constant 0 : index
    %c0_5 = arith.constant 0 : index
    %5 = vector.load %arg3[%c0_3, %c0_4, %c0_5] : memref<1x1x32xf32, #tpu.memory_space<vmem>>, vector<1x1x32xf32>
    %6 = vector.shape_cast %5 : vector<1x1x32xf32> to vector<32xf32>
    %c0_6 = arith.constant 0 : index
    %c0_7 = arith.constant 0 : index
    %c0_8 = arith.constant 0 : index
    %7 = vector.load %arg4[%c0_6, %c0_7, %c0_8] : memref<1x1x32xf32, #tpu.memory_space<vmem>>, vector<1x1x32xf32>
    %8 = vector.shape_cast %7 : vector<1x1x32xf32> to vector<32xf32>
    %cst = arith.constant dense<0.000000e+00> : vector<16xf32>
    %9 = vector.multi_reduction <add>, %4, %cst [1] : vector<16x32xf32> to vector<16xf32>
    %10 = vector.shape_cast %9 : vector<16xf32> to vector<16x1xf32>
    %cst_9 = arith.constant 3.200000e+01 : f32
    %11 = vector.broadcast %cst_9 : f32 to vector<16x1xf32>
    %12 = arith.divf %10, %11 : vector<16x1xf32>
    %13 = vector.broadcast %12 : vector<16x1xf32> to vector<16x32xf32>
    %14 = arith.subf %4, %13 : vector<16x32xf32>
    %15 = arith.mulf %14, %14 : vector<16x32xf32>
    %cst_10 = arith.constant dense<0.000000e+00> : vector<16xf32>
    %16 = vector.multi_reduction <add>, %15, %cst_10 [1] : vector<16x32xf32> to vector<16xf32>
    %17 = vector.shape_cast %16 : vector<16xf32> to vector<16x1xf32>
    %cst_11 = arith.constant 3.200000e+01 : f32
    %18 = vector.broadcast %cst_11 : f32 to vector<16x1xf32>
    %19 = arith.divf %17, %18 : vector<16x1xf32>
    %20 = vector.broadcast %12 : vector<16x1xf32> to vector<16x32xf32>
    %21 = arith.subf %4, %20 : vector<16x32xf32>
    %cst_12 = arith.constant 9.99999974E-6 : f32
    %22 = vector.broadcast %cst_12 : f32 to vector<16x1xf32>
    %23 = arith.addf %19, %22 : vector<16x1xf32>
    %24 = math.rsqrt %23 : vector<16x1xf32>
    %25 = vector.broadcast %24 : vector<16x1xf32> to vector<16x32xf32>
    %26 = arith.mulf %21, %25 : vector<16x32xf32>
    %27 = vector.shape_cast %6 : vector<32xf32> to vector<1x32xf32>
    %28 = vector.broadcast %27 : vector<1x32xf32> to vector<16x32xf32>
    %29 = arith.mulf %26, %28 : vector<16x32xf32>
    %30 = vector.shape_cast %8 : vector<32xf32> to vector<1x32xf32>
    %31 = vector.broadcast %30 : vector<1x32xf32> to vector<16x32xf32>
    %32 = arith.addf %29, %31 : vector<16x32xf32>
    %33 = arith.truncf %32 : vector<16x32xf32> to vector<16x32xbf16>
    %c0_13 = arith.constant 0 : index
    %c0_14 = arith.constant 0 : index
    %c0_15 = arith.constant 0 : index
    %34 = vector.load %arg5[%c0_13, %c0_14, %c0_15] : memref<1x32x96xbf16, #tpu.memory_space<vmem>>, vector<1x32x96xbf16>
    %35 = vector.shape_cast %34 : vector<1x32x96xbf16> to vector<32x96xbf16>
    %cst_16 = arith.constant dense<0.000000e+00> : vector<16x96xf32>
    %36 = tpu.matmul %33, %35, %cst_16 {dimension_numbers = #tpu.dot_dimension_numbers<[1], [0], [0], [1], [0, 0, 1, 1], [], []>} : vector<16x32xbf16>, vector<32x96xbf16>, vector<16x96xf32> -> vector<16x96xf32>
    %37 = arith.truncf %36 : vector<16x96xf32> to vector<16x96xbf16>
    %38 = vector.extract_strided_slice %37 {offsets = [0, 0], sizes = [16, 8], strides = [1, 1]} : vector<16x96xbf16> to vector<16x8xbf16>
    %39 = vector.shape_cast %38 : vector<16x8xbf16> to vector<2x8x8xbf16>
    %40 = vector.extract_strided_slice %37 {offsets = [0, 32], sizes = [16, 8], strides = [1, 1]} : vector<16x96xbf16> to vector<16x8xbf16>
    %41 = vector.shape_cast %40 : vector<16x8xbf16> to vector<2x8x8xbf16>
    %42 = vector.extract_strided_slice %37 {offsets = [0, 64], sizes = [16, 8], strides = [1, 1]} : vector<16x96xbf16> to vector<16x8xbf16>
    %43 = vector.shape_cast %42 : vector<16x8xbf16> to vector<2x8x8xbf16>
    "tpu.trace_start"() <{level = 10 : i32, message = "bnd,bmd->bnm"}> : () -> ()
    %cst_17 = arith.constant dense<0.000000e+00> : vector<2x8x8xf32>
    %44 = tpu.matmul %39, %41, %cst_17 {dimension_numbers = #tpu.dot_dimension_numbers<[2], [2], [1], [1], [0, 0, 0, 1, 1, 1], [0], [0]>} : vector<2x8x8xbf16>, vector<2x8x8xbf16>, vector<2x8x8xf32> -> vector<2x8x8xf32>
    "tpu.trace_stop"() : () -> ()
    %cst_18 = arith.constant dense<0xFF800000> : vector<2x8xf32>
    %45 = vector.multi_reduction <maximumf>, %44, %cst_18 [2] : vector<2x8x8xf32> to vector<2x8xf32>
    %46 = vector.shape_cast %45 : vector<2x8xf32> to vector<2x8x1xf32>
    %47 = vector.broadcast %46 : vector<2x8x1xf32> to vector<2x8x8xf32>
    %48 = arith.subf %44, %47 : vector<2x8x8xf32>
    %49 = math.exp %48 : vector<2x8x8xf32>
    %cst_19 = arith.constant dense<0.000000e+00> : vector<2x8xf32>
    %50 = vector.multi_reduction <add>, %49, %cst_19 [2] : vector<2x8x8xf32> to vector<2x8xf32>
    %51 = vector.shape_cast %50 : vector<2x8xf32> to vector<2x8x1xf32>
    %52 = tpu.reciprocal %51 {approx = true} : vector<2x8x1xf32> -> vector<2x8x1xf32>
    %53 = vector.broadcast %52 : vector<2x8x1xf32> to vector<2x8x8xf32>
    %54 = arith.mulf %49, %53 : vector<2x8x8xf32>
    %55 = arith.truncf %54 : vector<2x8x8xf32> to vector<2x8x8xbf16>
    "tpu.trace_start"() <{level = 10 : i32, message = "bnm,bmd->bnd"}> : () -> ()
    %cst_20 = arith.constant dense<0.000000e+00> : vector<2x8x8xf32>
    %56 = tpu.matmul %55, %43, %cst_20 {dimension_numbers = #tpu.dot_dimension_numbers<[2], [1], [1], [2], [0, 0, 0, 1, 1, 2], [0], [0]>} : vector<2x8x8xbf16>, vector<2x8x8xbf16>, vector<2x8x8xf32> -> vector<2x8x8xf32>
    "tpu.trace_stop"() : () -> ()
    %57 = arith.truncf %56 : vector<2x8x8xf32> to vector<2x8x8xbf16>
    %58 = vector.shape_cast %57 : vector<2x8x8xbf16> to vector<16x8xbf16>
    %59 = vector.extract_strided_slice %37 {offsets = [0, 8], sizes = [16, 8], strides = [1, 1]} : vector<16x96xbf16> to vector<16x8xbf16>
    %60 = vector.shape_cast %59 : vector<16x8xbf16> to vector<2x8x8xbf16>
    %61 = vector.extract_strided_slice %37 {offsets = [0, 40], sizes = [16, 8], strides = [1, 1]} : vector<16x96xbf16> to vector<16x8xbf16>
    %62 = vector.shape_cast %61 : vector<16x8xbf16> to vector<2x8x8xbf16>
    %63 = vector.extract_strided_slice %37 {offsets = [0, 72], sizes = [16, 8], strides = [1, 1]} : vector<16x96xbf16> to vector<16x8xbf16>
    %64 = vector.shape_cast %63 : vector<16x8xbf16> to vector<2x8x8xbf16>
    "tpu.trace_start"() <{level = 10 : i32, message = "bnd,bmd->bnm"}> : () -> ()
    %cst_21 = arith.constant dense<0.000000e+00> : vector<2x8x8xf32>
    %65 = tpu.matmul %60, %62, %cst_21 {dimension_numbers = #tpu.dot_dimension_numbers<[2], [2], [1], [1], [0, 0, 0, 1, 1, 1], [0], [0]>} : vector<2x8x8xbf16>, vector<2x8x8xbf16>, vector<2x8x8xf32> -> vector<2x8x8xf32>
    "tpu.trace_stop"() : () -> ()
    %cst_22 = arith.constant dense<0xFF800000> : vector<2x8xf32>
    %66 = vector.multi_reduction <maximumf>, %65, %cst_22 [2] : vector<2x8x8xf32> to vector<2x8xf32>
    %67 = vector.shape_cast %66 : vector<2x8xf32> to vector<2x8x1xf32>
    %68 = vector.broadcast %67 : vector<2x8x1xf32> to vector<2x8x8xf32>
    %69 = arith.subf %65, %68 : vector<2x8x8xf32>
    %70 = math.exp %69 : vector<2x8x8xf32>
    %cst_23 = arith.constant dense<0.000000e+00> : vector<2x8xf32>
    %71 = vector.multi_reduction <add>, %70, %cst_23 [2] : vector<2x8x8xf32> to vector<2x8xf32>
    %72 = vector.shape_cast %71 : vector<2x8xf32> to vector<2x8x1xf32>
    %73 = tpu.reciprocal %72 {approx = true} : vector<2x8x1xf32> -> vector<2x8x1xf32>
    %74 = vector.broadcast %73 : vector<2x8x1xf32> to vector<2x8x8xf32>
    %75 = arith.mulf %70, %74 : vector<2x8x8xf32>
    %76 = arith.truncf %75 : vector<2x8x8xf32> to vector<2x8x8xbf16>
    "tpu.trace_start"() <{level = 10 : i32, message = "bnm,bmd->bnd"}> : () -> ()
    %cst_24 = arith.constant dense<0.000000e+00> : vector<2x8x8xf32>
    %77 = tpu.matmul %76, %64, %cst_24 {dimension_numbers = #tpu.dot_dimension_numbers<[2], [1], [1], [2], [0, 0, 0, 1, 1, 2], [0], [0]>} : vector<2x8x8xbf16>, vector<2x8x8xbf16>, vector<2x8x8xf32> -> vector<2x8x8xf32>
    "tpu.trace_stop"() : () -> ()
    %78 = arith.truncf %77 : vector<2x8x8xf32> to vector<2x8x8xbf16>
    %79 = vector.shape_cast %78 : vector<2x8x8xbf16> to vector<16x8xbf16>
    %80 = vector.extract_strided_slice %37 {offsets = [0, 16], sizes = [16, 8], strides = [1, 1]} : vector<16x96xbf16> to vector<16x8xbf16>
    %81 = vector.shape_cast %80 : vector<16x8xbf16> to vector<2x8x8xbf16>
    %82 = vector.extract_strided_slice %37 {offsets = [0, 48], sizes = [16, 8], strides = [1, 1]} : vector<16x96xbf16> to vector<16x8xbf16>
    %83 = vector.shape_cast %82 : vector<16x8xbf16> to vector<2x8x8xbf16>
    %84 = vector.extract_strided_slice %37 {offsets = [0, 80], sizes = [16, 8], strides = [1, 1]} : vector<16x96xbf16> to vector<16x8xbf16>
    %85 = vector.shape_cast %84 : vector<16x8xbf16> to vector<2x8x8xbf16>
    "tpu.trace_start"() <{level = 10 : i32, message = "bnd,bmd->bnm"}> : () -> ()
    %cst_25 = arith.constant dense<0.000000e+00> : vector<2x8x8xf32>
    %86 = tpu.matmul %81, %83, %cst_25 {dimension_numbers = #tpu.dot_dimension_numbers<[2], [2], [1], [1], [0, 0, 0, 1, 1, 1], [0], [0]>} : vector<2x8x8xbf16>, vector<2x8x8xbf16>, vector<2x8x8xf32> -> vector<2x8x8xf32>
    "tpu.trace_stop"() : () -> ()
    %cst_26 = arith.constant dense<0xFF800000> : vector<2x8xf32>
    %87 = vector.multi_reduction <maximumf>, %86, %cst_26 [2] : vector<2x8x8xf32> to vector<2x8xf32>
    %88 = vector.shape_cast %87 : vector<2x8xf32> to vector<2x8x1xf32>
    %89 = vector.broadcast %88 : vector<2x8x1xf32> to vector<2x8x8xf32>
    %90 = arith.subf %86, %89 : vector<2x8x8xf32>
    %91 = math.exp %90 : vector<2x8x8xf32>
    %cst_27 = arith.constant dense<0.000000e+00> : vector<2x8xf32>
    %92 = vector.multi_reduction <add>, %91, %cst_27 [2] : vector<2x8x8xf32> to vector<2x8xf32>
    %93 = vector.shape_cast %92 : vector<2x8xf32> to vector<2x8x1xf32>
    %94 = tpu.reciprocal %93 {approx = true} : vector<2x8x1xf32> -> vector<2x8x1xf32>
    %95 = vector.broadcast %94 : vector<2x8x1xf32> to vector<2x8x8xf32>
    %96 = arith.mulf %91, %95 : vector<2x8x8xf32>
    %97 = arith.truncf %96 : vector<2x8x8xf32> to vector<2x8x8xbf16>
    "tpu.trace_start"() <{level = 10 : i32, message = "bnm,bmd->bnd"}> : () -> ()
    %cst_28 = arith.constant dense<0.000000e+00> : vector<2x8x8xf32>
    %98 = tpu.matmul %97, %85, %cst_28 {dimension_numbers = #tpu.dot_dimension_numbers<[2], [1], [1], [2], [0, 0, 0, 1, 1, 2], [0], [0]>} : vector<2x8x8xbf16>, vector<2x8x8xbf16>, vector<2x8x8xf32> -> vector<2x8x8xf32>
    "tpu.trace_stop"() : () -> ()
    %99 = arith.truncf %98 : vector<2x8x8xf32> to vector<2x8x8xbf16>
    %100 = vector.shape_cast %99 : vector<2x8x8xbf16> to vector<16x8xbf16>
    %101 = vector.extract_strided_slice %37 {offsets = [0, 24], sizes = [16, 8], strides = [1, 1]} : vector<16x96xbf16> to vector<16x8xbf16>
    %102 = vector.shape_cast %101 : vector<16x8xbf16> to vector<2x8x8xbf16>
    %103 = vector.extract_strided_slice %37 {offsets = [0, 56], sizes = [16, 8], strides = [1, 1]} : vector<16x96xbf16> to vector<16x8xbf16>
    %104 = vector.shape_cast %103 : vector<16x8xbf16> to vector<2x8x8xbf16>
    %105 = vector.extract_strided_slice %37 {offsets = [0, 88], sizes = [16, 8], strides = [1, 1]} : vector<16x96xbf16> to vector<16x8xbf16>
    %106 = vector.shape_cast %105 : vector<16x8xbf16> to vector<2x8x8xbf16>
    "tpu.trace_start"() <{level = 10 : i32, message = "bnd,bmd->bnm"}> : () -> ()
    %cst_29 = arith.constant dense<0.000000e+00> : vector<2x8x8xf32>
    %107 = tpu.matmul %102, %104, %cst_29 {dimension_numbers = #tpu.dot_dimension_numbers<[2], [2], [1], [1], [0, 0, 0, 1, 1, 1], [0], [0]>} : vector<2x8x8xbf16>, vector<2x8x8xbf16>, vector<2x8x8xf32> -> vector<2x8x8xf32>
    "tpu.trace_stop"() : () -> ()
    %cst_30 = arith.constant dense<0xFF800000> : vector<2x8xf32>
    %108 = vector.multi_reduction <maximumf>, %107, %cst_30 [2] : vector<2x8x8xf32> to vector<2x8xf32>
    %109 = vector.shape_cast %108 : vector<2x8xf32> to vector<2x8x1xf32>
    %110 = vector.broadcast %109 : vector<2x8x1xf32> to vector<2x8x8xf32>
    %111 = arith.subf %107, %110 : vector<2x8x8xf32>
    %112 = math.exp %111 : vector<2x8x8xf32>
    %cst_31 = arith.constant dense<0.000000e+00> : vector<2x8xf32>
    %113 = vector.multi_reduction <add>, %112, %cst_31 [2] : vector<2x8x8xf32> to vector<2x8xf32>
    %114 = vector.shape_cast %113 : vector<2x8xf32> to vector<2x8x1xf32>
    %115 = tpu.reciprocal %114 {approx = true} : vector<2x8x1xf32> -> vector<2x8x1xf32>
    %116 = vector.broadcast %115 : vector<2x8x1xf32> to vector<2x8x8xf32>
    %117 = arith.mulf %112, %116 : vector<2x8x8xf32>
    %118 = arith.truncf %117 : vector<2x8x8xf32> to vector<2x8x8xbf16>
    "tpu.trace_start"() <{level = 10 : i32, message = "bnm,bmd->bnd"}> : () -> ()
    %cst_32 = arith.constant dense<0.000000e+00> : vector<2x8x8xf32>
    %119 = tpu.matmul %118, %106, %cst_32 {dimension_numbers = #tpu.dot_dimension_numbers<[2], [1], [1], [2], [0, 0, 0, 1, 1, 2], [0], [0]>} : vector<2x8x8xbf16>, vector<2x8x8xbf16>, vector<2x8x8xf32> -> vector<2x8x8xf32>
    "tpu.trace_stop"() : () -> ()
    %120 = arith.truncf %119 : vector<2x8x8xf32> to vector<2x8x8xbf16>
    %121 = vector.shape_cast %120 : vector<2x8x8xbf16> to vector<16x8xbf16>
    %122 = tpu.concatenate %58, %79, %100, %121 in 1 : vector<16x8xbf16>, vector<16x8xbf16>, vector<16x8xbf16>, vector<16x8xbf16> -> vector<16x32xbf16>
    %c0_33 = arith.constant 0 : index
    %c0_34 = arith.constant 0 : index
    %c0_35 = arith.constant 0 : index
    %123 = vector.load %arg6[%c0_33, %c0_34, %c0_35] : memref<1x32x32xbf16, #tpu.memory_space<vmem>>, vector<1x32x32xbf16>
    %124 = vector.shape_cast %123 : vector<1x32x32xbf16> to vector<32x32xbf16>
    %cst_36 = arith.constant dense<0.000000e+00> : vector<16x32xf32>
    %125 = tpu.matmul %122, %124, %cst_36 {dimension_numbers = #tpu.dot_dimension_numbers<[1], [0], [0], [1], [0, 0, 1, 1], [], []>} : vector<16x32xbf16>, vector<32x32xbf16>, vector<16x32xf32> -> vector<16x32xf32>
    %126 = arith.addf %4, %125 : vector<16x32xf32>
    %c0_37 = arith.constant 0 : index
    %c0_38 = arith.constant 0 : index
    %c0_39 = arith.constant 0 : index
    %127 = vector.load %arg7[%c0_37, %c0_38, %c0_39] : memref<1x1x32xf32, #tpu.memory_space<vmem>>, vector<1x1x32xf32>
    %128 = vector.shape_cast %127 : vector<1x1x32xf32> to vector<32xf32>
    %129 = vector.shape_cast %128 : vector<32xf32> to vector<1x32xf32>
    %130 = vector.broadcast %129 : vector<1x32xf32> to vector<16x32xf32>
    %131 = arith.addf %126, %130 : vector<16x32xf32>
    %c0_40 = arith.constant 0 : index
    %c0_41 = arith.constant 0 : index
    %c0_42 = arith.constant 0 : index
    %132 = vector.load %arg8[%c0_40, %c0_41, %c0_42] : memref<1x1x32xf32, #tpu.memory_space<vmem>>, vector<1x1x32xf32>
    %133 = vector.shape_cast %132 : vector<1x1x32xf32> to vector<32xf32>
    %c0_43 = arith.constant 0 : index
    %c0_44 = arith.constant 0 : index
    %c0_45 = arith.constant 0 : index
    %134 = vector.load %arg9[%c0_43, %c0_44, %c0_45] : memref<1x1x32xf32, #tpu.memory_space<vmem>>, vector<1x1x32xf32>
    %135 = vector.shape_cast %134 : vector<1x1x32xf32> to vector<32xf32>
    %cst_46 = arith.constant dense<0.000000e+00> : vector<16xf32>
    %136 = vector.multi_reduction <add>, %131, %cst_46 [1] : vector<16x32xf32> to vector<16xf32>
    %137 = vector.shape_cast %136 : vector<16xf32> to vector<16x1xf32>
    %cst_47 = arith.constant 3.200000e+01 : f32
    %138 = vector.broadcast %cst_47 : f32 to vector<16x1xf32>
    %139 = arith.divf %137, %138 : vector<16x1xf32>
    %140 = vector.broadcast %139 : vector<16x1xf32> to vector<16x32xf32>
    %141 = arith.subf %131, %140 : vector<16x32xf32>
    %142 = arith.mulf %141, %141 : vector<16x32xf32>
    %cst_48 = arith.constant dense<0.000000e+00> : vector<16xf32>
    %143 = vector.multi_reduction <add>, %142, %cst_48 [1] : vector<16x32xf32> to vector<16xf32>
    %144 = vector.shape_cast %143 : vector<16xf32> to vector<16x1xf32>
    %cst_49 = arith.constant 3.200000e+01 : f32
    %145 = vector.broadcast %cst_49 : f32 to vector<16x1xf32>
    %146 = arith.divf %144, %145 : vector<16x1xf32>
    %147 = vector.broadcast %139 : vector<16x1xf32> to vector<16x32xf32>
    %148 = arith.subf %131, %147 : vector<16x32xf32>
    %cst_50 = arith.constant 9.99999974E-6 : f32
    %149 = vector.broadcast %cst_50 : f32 to vector<16x1xf32>
    %150 = arith.addf %146, %149 : vector<16x1xf32>
    %151 = math.rsqrt %150 : vector<16x1xf32>
    %152 = vector.broadcast %151 : vector<16x1xf32> to vector<16x32xf32>
    %153 = arith.mulf %148, %152 : vector<16x32xf32>
    %154 = vector.shape_cast %133 : vector<32xf32> to vector<1x32xf32>
    %155 = vector.broadcast %154 : vector<1x32xf32> to vector<16x32xf32>
    %156 = arith.mulf %153, %155 : vector<16x32xf32>
    %157 = vector.shape_cast %135 : vector<32xf32> to vector<1x32xf32>
    %158 = vector.broadcast %157 : vector<1x32xf32> to vector<16x32xf32>
    %159 = arith.addf %156, %158 : vector<16x32xf32>
    %160 = arith.truncf %159 : vector<16x32xf32> to vector<16x32xbf16>
    %c0_51 = arith.constant 0 : index
    %c0_52 = arith.constant 0 : index
    %c0_53 = arith.constant 0 : index
    %161 = vector.load %arg10[%c0_51, %c0_52, %c0_53] : memref<1x32x128xbf16, #tpu.memory_space<vmem>>, vector<1x32x128xbf16>
    %162 = vector.shape_cast %161 : vector<1x32x128xbf16> to vector<32x128xbf16>
    %cst_54 = arith.constant dense<0.000000e+00> : vector<16x128xf32>
    %163 = tpu.matmul %160, %162, %cst_54 {dimension_numbers = #tpu.dot_dimension_numbers<[1], [0], [0], [1], [0, 0, 1, 1], [], []>} : vector<16x32xbf16>, vector<32x128xbf16>, vector<16x128xf32> -> vector<16x128xf32>
    %c0_55 = arith.constant 0 : index
    %c0_56 = arith.constant 0 : index
    %c0_57 = arith.constant 0 : index
    %164 = vector.load %arg11[%c0_55, %c0_56, %c0_57] : memref<1x1x128xf32, #tpu.memory_space<vmem>>, vector<1x1x128xf32>
    %165 = vector.shape_cast %164 : vector<1x1x128xf32> to vector<128xf32>
    %166 = vector.shape_cast %165 : vector<128xf32> to vector<1x128xf32>
    %167 = vector.broadcast %166 : vector<1x128xf32> to vector<16x128xf32>
    %168 = arith.addf %163, %167 : vector<16x128xf32>
    %cst_58 = arith.constant 5.000000e-01 : f32
    %169 = vector.broadcast %cst_58 : f32 to vector<16x128xf32>
    %170 = arith.mulf %169, %168 : vector<16x128xf32>
    %cst_59 = arith.constant 0.707106769 : f32
    %171 = vector.broadcast %cst_59 : f32 to vector<16x128xf32>
    %172 = arith.mulf %168, %171 : vector<16x128xf32>
    %173 = math.absf %172 : vector<16x128xf32>
    %cst_60 = arith.constant 0.327591091 : f32
    %174 = vector.broadcast %cst_60 : f32 to vector<16x128xf32>
    %175 = arith.mulf %174, %173 : vector<16x128xf32>
    %cst_61 = arith.constant 1.000000e+00 : f32
    %176 = vector.broadcast %cst_61 : f32 to vector<16x128xf32>
    %177 = arith.addf %176, %175 : vector<16x128xf32>
    %cst_62 = arith.constant 1.000000e+00 : f32
    %178 = vector.broadcast %cst_62 : f32 to vector<16x128xf32>
    %179 = arith.divf %178, %177 : vector<16x128xf32>
    %cst_63 = arith.constant 1.06140542 : f32
    %180 = vector.broadcast %cst_63 : f32 to vector<16x128xf32>
    %181 = arith.mulf %180, %179 : vector<16x128xf32>
    %cst_64 = arith.constant -1.45315206 : f32
    %182 = vector.broadcast %cst_64 : f32 to vector<16x128xf32>
    %183 = arith.addf %181, %182 : vector<16x128xf32>
    %184 = arith.mulf %183, %179 : vector<16x128xf32>
    %cst_65 = arith.constant 1.42141378 : f32
    %185 = vector.broadcast %cst_65 : f32 to vector<16x128xf32>
    %186 = arith.addf %184, %185 : vector<16x128xf32>
    %187 = arith.mulf %186, %179 : vector<16x128xf32>
    %cst_66 = arith.constant -0.284496725 : f32
    %188 = vector.broadcast %cst_66 : f32 to vector<16x128xf32>
    %189 = arith.addf %187, %188 : vector<16x128xf32>
    %190 = arith.mulf %189, %179 : vector<16x128xf32>
    %cst_67 = arith.constant 0.254829586 : f32
    %191 = vector.broadcast %cst_67 : f32 to vector<16x128xf32>
    %192 = arith.addf %190, %191 : vector<16x128xf32>
    %193 = arith.mulf %192, %179 : vector<16x128xf32>
    %cst_68 = arith.constant 0.000000e+00 : f32
    %194 = vector.broadcast %cst_68 : f32 to vector<16x128xf32>
    %195 = arith.subf %194, %173 : vector<16x128xf32>
    %196 = arith.mulf %195, %173 : vector<16x128xf32>
    %197 = math.exp %196 : vector<16x128xf32>
    %198 = arith.mulf %193, %197 : vector<16x128xf32>
    %cst_69 = arith.constant 1.000000e+00 : f32
    %199 = vector.broadcast %cst_69 : f32 to vector<16x128xf32>
    %200 = arith.subf %199, %198 : vector<16x128xf32>
    %cst_70 = arith.constant 0.000000e+00 : f32
    %201 = vector.broadcast %cst_70 : f32 to vector<16x128xf32>
    %202 = arith.cmpf oge, %172, %201 : vector<16x128xf32>
    %cst_71 = arith.constant 0.000000e+00 : f32
    %203 = vector.broadcast %cst_71 : f32 to vector<16x128xf32>
    %204 = arith.subf %203, %200 : vector<16x128xf32>
    %205 = arith.select %202, %200, %204 : vector<16x128xi1>, vector<16x128xf32>
    %cst_72 = arith.constant 1.000000e+00 : f32
    %206 = vector.broadcast %cst_72 : f32 to vector<16x128xf32>
    %207 = arith.addf %206, %205 : vector<16x128xf32>
    %208 = arith.mulf %170, %207 : vector<16x128xf32>
    %209 = arith.truncf %208 : vector<16x128xf32> to vector<16x128xbf16>
    %c0_73 = arith.constant 0 : index
    %c0_74 = arith.constant 0 : index
    %c0_75 = arith.constant 0 : index
    %210 = vector.load %arg12[%c0_73, %c0_74, %c0_75] : memref<1x128x32xbf16, #tpu.memory_space<vmem>>, vector<1x128x32xbf16>
    %211 = vector.shape_cast %210 : vector<1x128x32xbf16> to vector<128x32xbf16>
    %cst_76 = arith.constant dense<0.000000e+00> : vector<16x32xf32>
    %212 = tpu.matmul %209, %211, %cst_76 {dimension_numbers = #tpu.dot_dimension_numbers<[1], [0], [0], [1], [0, 0, 1, 1], [], []>} : vector<16x128xbf16>, vector<128x32xbf16>, vector<16x32xf32> -> vector<16x32xf32>
    %c0_77 = arith.constant 0 : index
    %c0_78 = arith.constant 0 : index
    %c0_79 = arith.constant 0 : index
    %213 = vector.load %arg13[%c0_77, %c0_78, %c0_79] : memref<1x1x32xf32, #tpu.memory_space<vmem>>, vector<1x1x32xf32>
    %214 = vector.shape_cast %213 : vector<1x1x32xf32> to vector<32xf32>
    %215 = vector.shape_cast %214 : vector<32xf32> to vector<1x32xf32>
    %216 = vector.broadcast %215 : vector<1x32xf32> to vector<16x32xf32>
    %217 = arith.addf %212, %216 : vector<16x32xf32>
    %218 = arith.addf %131, %217 : vector<16x32xf32>
    %219 = vector.shape_cast %218 : vector<16x32xf32> to vector<2x8x32xf32>
    %c0_80 = arith.constant 0 : index
    %c0_81 = arith.constant 0 : index
    %c0_82 = arith.constant 0 : index
    %220 = vector.load %arg17[%c0_80, %c0_81, %c0_82] : memref<2x8x32xf32, #tpu.memory_space<vmem>>, vector<2x8x32xf32>
    tpu.vector_store %arg17[%c0_80, %c0_81, %c0_82], %219 {strides = array<i32>} : memref<2x8x32xf32, #tpu.memory_space<vmem>>, vector<2x8x32xf32>,
    %c3_i32 = arith.constant 3 : i32
    %221 = arith.cmpi eq, %arg1, %c3_i32 : i32
    %222 = arith.extui %221 : i1 to i32
    %c0_i32_83 = arith.constant 0 : i32
    %223 = arith.cmpi ne, %222, %c0_i32_83 : i32
    scf.if %223 {
      %c0_84 = arith.constant 0 : index
      %c0_85 = arith.constant 0 : index
      %224 = vector.load %arg14[%c0_84, %c0_85] : memref<1x32xf32, #tpu.memory_space<vmem>>, vector<1x32xf32>
      %225 = vector.shape_cast %224 : vector<1x32xf32> to vector<32xf32>
      %c0_86 = arith.constant 0 : index
      %c0_87 = arith.constant 0 : index
      %226 = vector.load %arg15[%c0_86, %c0_87] : memref<1x32xf32, #tpu.memory_space<vmem>>, vector<1x32xf32>
      %227 = vector.shape_cast %226 : vector<1x32xf32> to vector<32xf32>
      %cst_88 = arith.constant dense<0.000000e+00> : vector<16xf32>
      %228 = vector.multi_reduction <add>, %218, %cst_88 [1] : vector<16x32xf32> to vector<16xf32>
      %229 = vector.shape_cast %228 : vector<16xf32> to vector<16x1xf32>
      %cst_89 = arith.constant 3.200000e+01 : f32
      %230 = vector.broadcast %cst_89 : f32 to vector<16x1xf32>
      %231 = arith.divf %229, %230 : vector<16x1xf32>
      %232 = vector.broadcast %231 : vector<16x1xf32> to vector<16x32xf32>
      %233 = arith.subf %218, %232 : vector<16x32xf32>
      %234 = arith.mulf %233, %233 : vector<16x32xf32>
      %cst_90 = arith.constant dense<0.000000e+00> : vector<16xf32>
      %235 = vector.multi_reduction <add>, %234, %cst_90 [1] : vector<16x32xf32> to vector<16xf32>
      %236 = vector.shape_cast %235 : vector<16xf32> to vector<16x1xf32>
      %cst_91 = arith.constant 3.200000e+01 : f32
      %237 = vector.broadcast %cst_91 : f32 to vector<16x1xf32>
      %238 = arith.divf %236, %237 : vector<16x1xf32>
      %239 = vector.broadcast %231 : vector<16x1xf32> to vector<16x32xf32>
      %240 = arith.subf %218, %239 : vector<16x32xf32>
      %cst_92 = arith.constant 9.99999974E-6 : f32
      %241 = vector.broadcast %cst_92 : f32 to vector<16x1xf32>
      %242 = arith.addf %238, %241 : vector<16x1xf32>
      %243 = math.rsqrt %242 : vector<16x1xf32>
      %244 = vector.broadcast %243 : vector<16x1xf32> to vector<16x32xf32>
      %245 = arith.mulf %240, %244 : vector<16x32xf32>
      %246 = vector.shape_cast %225 : vector<32xf32> to vector<1x32xf32>
      %247 = vector.broadcast %246 : vector<1x32xf32> to vector<16x32xf32>
      %248 = arith.mulf %245, %247 : vector<16x32xf32>
      %249 = vector.shape_cast %227 : vector<32xf32> to vector<1x32xf32>
      %250 = vector.broadcast %249 : vector<1x32xf32> to vector<16x32xf32>
      %251 = arith.addf %248, %250 : vector<16x32xf32>
      %252 = vector.shape_cast %251 : vector<16x32xf32> to vector<2x8x32xf32>
      %c0_93 = arith.constant 0 : index
      %c0_94 = arith.constant 0 : index
      %c0_95 = arith.constant 0 : index
      %253 = vector.load %arg16[%c0_93, %c0_94, %c0_95] : memref<2x8x32xf32, #tpu.memory_space<vmem>>, vector<2x8x32xf32>
      tpu.vector_store %arg16[%c0_93, %c0_94, %c0_95], %252 {strides = array<i32>} : memref<2x8x32xf32, #tpu.memory_space<vmem>>, vector<2x8x32xf32>,
    } else {
    }
    return
  }
  func.func @transform_0(%arg0: i32, %arg1: i32) -> (i32, i32, i32) {
    %c0_i32 = arith.constant 0 : i32
    %c0_i32_0 = arith.constant 0 : i32
    %c0_i32_1 = arith.constant 0 : i32
    return %arg0, %c0_i32, %c0_i32_0 : i32, i32, i32
  }
  func.func @transform_1(%arg0: i32, %arg1: i32) -> (i32, i32, i32) {
    %c0_i32 = arith.constant 0 : i32
    %c0_i32_0 = arith.constant 0 : i32
    %c0_i32_1 = arith.constant 0 : i32
    return %arg1, %c0_i32, %c0_i32_0 : i32, i32, i32
  }
  func.func @transform_2(%arg0: i32, %arg1: i32) -> (i32, i32, i32) {
    %c0_i32 = arith.constant 0 : i32
    %c0_i32_0 = arith.constant 0 : i32
    %c0_i32_1 = arith.constant 0 : i32
    return %arg1, %c0_i32, %c0_i32_0 : i32, i32, i32
  }
  func.func @transform_3(%arg0: i32, %arg1: i32) -> (i32, i32, i32) {
    %c0_i32 = arith.constant 0 : i32
    %c0_i32_0 = arith.constant 0 : i32
    %c0_i32_1 = arith.constant 0 : i32
    return %arg1, %c0_i32, %c0_i32_0 : i32, i32, i32
  }
  func.func @transform_4(%arg0: i32, %arg1: i32) -> (i32, i32, i32) {
    %c0_i32 = arith.constant 0 : i32
    %c0_i32_0 = arith.constant 0 : i32
    %c0_i32_1 = arith.constant 0 : i32
    return %arg1, %c0_i32, %c0_i32_0 : i32, i32, i32
  }
  func.func @transform_5(%arg0: i32, %arg1: i32) -> (i32, i32, i32) {
    %c0_i32 = arith.constant 0 : i32
    %c0_i32_0 = arith.constant 0 : i32
    %c0_i32_1 = arith.constant 0 : i32
    return %arg1, %c0_i32, %c0_i32_0 : i32, i32, i32
  }
  func.func @transform_6(%arg0: i32, %arg1: i32) -> (i32, i32, i32) {
    %c0_i32 = arith.constant 0 : i32
    %c0_i32_0 = arith.constant 0 : i32
    %c0_i32_1 = arith.constant 0 : i32
    return %arg1, %c0_i32, %c0_i32_0 : i32, i32, i32
  }
  func.func @transform_7(%arg0: i32, %arg1: i32) -> (i32, i32, i32) {
    %c0_i32 = arith.constant 0 : i32
    %c0_i32_0 = arith.constant 0 : i32
    %c0_i32_1 = arith.constant 0 : i32
    return %arg1, %c0_i32, %c0_i32_0 : i32, i32, i32
  }
  func.func @transform_8(%arg0: i32, %arg1: i32) -> (i32, i32, i32) {
    %c0_i32 = arith.constant 0 : i32
    %c0_i32_0 = arith.constant 0 : i32
    %c0_i32_1 = arith.constant 0 : i32
    return %arg1, %c0_i32, %c0_i32_0 : i32, i32, i32
  }
  func.func @transform_9(%arg0: i32, %arg1: i32) -> (i32, i32, i32) {
    %c0_i32 = arith.constant 0 : i32
    %c0_i32_0 = arith.constant 0 : i32
    %c0_i32_1 = arith.constant 0 : i32
    return %arg1, %c0_i32, %c0_i32_0 : i32, i32, i32
  }
  func.func @transform_10(%arg0: i32, %arg1: i32) -> (i32, i32, i32) {
    %c0_i32 = arith.constant 0 : i32
    %c0_i32_0 = arith.constant 0 : i32
    %c0_i32_1 = arith.constant 0 : i32
    return %arg1, %c0_i32, %c0_i32_0 : i32, i32, i32
  }
  func.func @transform_11(%arg0: i32, %arg1: i32) -> (i32, i32, i32) {
    %c0_i32 = arith.constant 0 : i32
    %c0_i32_0 = arith.constant 0 : i32
    %c0_i32_1 = arith.constant 0 : i32
    return %arg1, %c0_i32, %c0_i32_0 : i32, i32, i32
  }
  func.func @transform_12(%arg0: i32, %arg1: i32) -> (i32, i32) {
    %c0_i32 = arith.constant 0 : i32
    %c0_i32_0 = arith.constant 0 : i32
    %c0_i32_1 = arith.constant 0 : i32
    return %c0_i32, %c0_i32_0 : i32, i32
  }
  func.func @transform_13(%arg0: i32, %arg1: i32) -> (i32, i32) {
    %c0_i32 = arith.constant 0 : i32
    %c0_i32_0 = arith.constant 0 : i32
    %c0_i32_1 = arith.constant 0 : i32
    return %c0_i32, %c0_i32_0 : i32, i32
  }
  func.func @transform_14(%arg0: i32, %arg1: i32) -> (i32, i32, i32) {
    %c0_i32 = arith.constant 0 : i32
    %c0_i32_0 = arith.constant 0 : i32
    %c0_i32_1 = arith.constant 0 : i32
    return %arg0, %c0_i32, %c0_i32_0 : i32, i32, i32
  }
}

</mosaic_0001>

<llo_original>
// kernel: transformer_decoder.1
$region0: #{transformer_decoder.1}
  #allocation0 [shape = 'u32[]', space=smem, size = 0x4, offset = 0x4, fixed_abs, tag = 'smem constant byte address 0x4 - core index']
  #allocation1 [shape = 'u32[72,128]{1,0:T(1,128)}', space=vmem, size = 0x9000, scoped, tag = 'internal scratch']
  #allocation2 [shape = 'f32[2,8,32]{2,1,0:T(8,128)}', space=vmem, size = 0x2000, scoped, tag = 'scratch operand']
  %s0 = inlined_call_operand.hbm [shape: f32[2,8,32], index: 0, kind: input, shape index: {}, may-alias: {0,14}]
  %s1 = inlined_call_operand.vmem [shape: f32[4,1,32], index: 1, kind: input, shape index: {}]
  %s2 = inlined_call_operand.vmem [shape: f32[4,1,32], index: 2, kind: input, shape index: {}]
  %s3 = inlined_call_operand.vmem [shape: bf16[4,32,96], index: 3, kind: input, shape index: {}]
  %s4 = inlined_call_operand.vmem [shape: bf16[4,32,32], index: 4, kind: input, shape index: {}]
  %s5 = inlined_call_operand.vmem [shape: f32[4,1,32], index: 5, kind: input, shape index: {}]
  %s6 = inlined_call_operand.vmem [shape: f32[4,1,32], index: 6, kind: input, shape index: {}]
  %s7 = inlined_call_operand.vmem [shape: f32[4,1,32], index: 7, kind: input, shape index: {}]
  %s8 = inlined_call_operand.vmem [shape: bf16[4,32,128], index: 8, kind: input, shape index: {}]
  %s9 = inlined_call_operand.vmem [shape: f32[4,1,128], index: 9, kind: input, shape index: {}]
  %s10 = inlined_call_operand.vmem [shape: bf16[4,128,32], index: 10, kind: input, shape index: {}]
  %s11 = inlined_call_operand.vmem [shape: f32[4,1,32], index: 11, kind: input, shape index: {}]
  %s12 = inlined_call_operand.vmem [shape: f32[1,32], index: 12, kind: input, shape index: {}]
  %s13 = inlined_call_operand.vmem [shape: f32[1,32], index: 13, kind: input, shape index: {}]
  %s14 = inlined_call_operand.hbm [shape: f32[2,8,32], index: 14, kind: output, shape index: {}, may-alias: {0,14}]
  %s15 = sld [smem:[#allocation0]]
  $region101: #{transformer_decoder.1} parent=0
    _
  %s17 = ssub.s32 1, %s15
  %s18 = scalar_select 0, %s17, %s15
  $region1: #{transformer_decoder.1} parent=0
    #allocation3 [shape = 'u8[8192]{0}', space=vmem, size = 0x2000, scoped, tag = 'input window, operand 0, single buffered']
    #allocation4 [shape = 's32[2]{0}', space=sflag, size = 0x8, scoped, tag = 'scoped memory for transformer_decoder.1']
    #allocation5 [shape = 's32[2]{0}', space=sflag, size = 0x8, scoped, tag = 'scoped memory for transformer_decoder.1']
    #allocation6 [shape = 'u8[8192]{0}', space=vmem, size = 0x2000, scoped, tag = 'output window, operand 0, single buffered']
    %19 = vsyncpa [#allocation4], 0
    %20 = vsyncpa [#allocation5], 0
    loop: start=0, step=1, limit=6
    $region2: #{transformer_decoder.1} parent=1 // loop_pre_header
      _
    $region3: #{transformer_decoder.1} parent=1 // loop_header
      %s22 = sphi 0, %s26
      %p23 = scmp.ge.s32.totalorder %s22, 6
      %s29 = sphi 0, %s41
      %s30 = sphi 0, %s37
      %s31 = sphi 0, %s29
      %s32 = sphi 0, %s30
      %s33 = sphi 0, %s31
      %s34 = sphi 0, %s32
      %s44 = sphi 0, %s46
      %s47 = sphi 0, %s44
      %s48 = sphi 0, %s47
      %s64 = sphi 0, %s48
      %s70 = sphi 0, %s72
      %s73 = sphi 0, %s70
      %s74 = sphi 0, %s73
      %s90 = sphi 0, %s74
      %s96 = sphi 0, %s98
      %s99 = sphi 0, %s96
      %s100 = sphi 0, %s99
      %s116 = sphi 0, %s100
      %s122 = sphi 0, %s124
      %s125 = sphi 0, %s122
      %s126 = sphi 0, %s125
      %s142 = sphi 0, %s126
      %s148 = sphi 0, %s150
      %s151 = sphi 0, %s148
      %s152 = sphi 0, %s151
      %s168 = sphi 0, %s152
      %s174 = sphi 0, %s176
      %s177 = sphi 0, %s174
      %s178 = sphi 0, %s177
      %s194 = sphi 0, %s178
      %s200 = sphi 0, %s202
      %s203 = sphi 0, %s200
      %s204 = sphi 0, %s203
      %s220 = sphi 0, %s204
      %s226 = sphi 0, %s228
      %s229 = sphi 0, %s226
      %s230 = sphi 0, %s229
      %s246 = sphi 0, %s230
      %s252 = sphi 0, %s254
      %s255 = sphi 0, %s252
      %s256 = sphi 0, %s255
      %s272 = sphi 0, %s256
      %s278 = sphi 0, %s280
      %s281 = sphi 0, %s278
      %s282 = sphi 0, %s281
      %s298 = sphi 0, %s282
      %s304 = sphi 0, %s306
      %s307 = sphi 0, %s304
      %s308 = sphi 0, %s307
      %s324 = sphi 0, %s308
      %s330 = sphi 0, %s332
      %s333 = sphi 0, %s330
      %s334 = sphi 0, %s333
      %s350 = sphi 0, %s334
      %s354 = sphi 0, %s354
      %s356 = sphi 0, %s354
      %s357 = sphi 0, %s356
      %s371 = sphi 0, %s357
      %s375 = sphi 0, %s375
      %s377 = sphi 0, %s375
      %s378 = sphi 0, %s377
      %s392 = sphi 0, %s378
      %s398 = sphi 0, %s400
      %s401 = sphi 0, %s398
      %s402 = sphi 0, %s401
      %s418 = sphi 0, %s402
    $region4: #{transformer_decoder.1} parent=1 // loop_header_branch
      %25 = sbr.rel (%p23) target = $region8
    $region5: #{transformer_decoder.1} parent=1 // loop_body
      %s27 = ssub.s32 %s22, 1
      %s28 = ssub.s32 %s22, 2
      %s35 = sadd.s32 1, %s30
      %p36 = scmp.ge.s32.totalorder %s35, 4
      %s37 = scalar_select %p36, 0, %s35
      %s38 = sadd.s32 1, %s29
      %s39 = scalar_select %p36, %s38, %s29
      %p40 = scmp.ge.s32.totalorder %s39, 1
      %s41 = scalar_select %p40, 0, %s39
      %s42 = ssub.s32 %s29, %s41
      %p43 = scmp.eq.s32.totalorder %s42, 0
      %s45 = sadd.s32 %s44, 1
      %s46 = scalar_select %p43, %s44, %s45
      %p49 = pneg %p43
      %p50 = scmp.eq.s32.totalorder %s22, 3
      %p51 = por %p49, %p50
      %p52 = scmp.ne.s32.totalorder %s44, %s47
      %p53 = scmp.eq.s32.totalorder %s22, 0
      %p54 = por %p52, %p53
      %p55 = scmp.ne.s32.totalorder %s44, %s47
      %p56 = scmp.eq.s32.totalorder %s27, 3
      %p57 = por %p55, %p56
      %p58 = scmp.ne.s32.totalorder %s47, %s48
      %p59 = scmp.eq.s32.totalorder %s27, 0
      %p60 = por %p58, %p59
      %p61 = scmp.ne.s32.totalorder %s47, %s48
      %p62 = scmp.eq.s32.totalorder %s28, 3
      %p63 = por %p61, %p62
      %p65 = scmp.ne.s32.totalorder %s48, %s64
      %p66 = scmp.eq.s32.totalorder %s28, 0
      %p67 = por %p65, %p66
      %s68 = ssub.s32 %s30, %s37
      %p69 = scmp.eq.s32.totalorder %s68, 0
      %s71 = sadd.s32 %s70, 1
      %s72 = scalar_select %p69, %s70, %s71
      %p75 = pneg %p69
      %p76 = scmp.eq.s32.totalorder %s22, 3
      %p77 = por %p75, %p76
      %p78 = scmp.ne.s32.totalorder %s70, %s73
      %p79 = scmp.eq.s32.totalorder %s22, 0
      %p80 = por %p78, %p79
      %p81 = scmp.ne.s32.totalorder %s70, %s73
      %p82 = scmp.eq.s32.totalorder %s27, 3
      %p83 = por %p81, %p82
      %p84 = scmp.ne.s32.totalorder %s73, %s74
      %p85 = scmp.eq.s32.totalorder %s27, 0
      %p86 = por %p84, %p85
      %p87 = scmp.ne.s32.totalorder %s73, %s74
      %p88 = scmp.eq.s32.totalorder %s28, 3
      %p89 = por %p87, %p88
      %p91 = scmp.ne.s32.totalorder %s74, %s90
      %p92 = scmp.eq.s32.totalorder %s28, 0
      %p93 = por %p91, %p92
      %s94 = ssub.s32 %s30, %s37
      %p95 = scmp.eq.s32.totalorder %s94, 0
      %s97 = sadd.s32 %s96, 1
      %s98 = scalar_select %p95, %s96, %s97
      %p101 = pneg %p95
      %p102 = scmp.eq.s32.totalorder %s22, 3
      %p103 = por %p101, %p102
      %p104 = scmp.ne.s32.totalorder %s96, %s99
      %p105 = scmp.eq.s32.totalorder %s22, 0
      %p106 = por %p104, %p105
      %p107 = scmp.ne.s32.totalorder %s96, %s99
      %p108 = scmp.eq.s32.totalorder %s27, 3
      %p109 = por %p107, %p108
      %p110 = scmp.ne.s32.totalorder %s99, %s100
      %p111 = scmp.eq.s32.totalorder %s27, 0
      %p112 = por %p110, %p111
      %p113 = scmp.ne.s32.totalorder %s99, %s100
      %p114 = scmp.eq.s32.totalorder %s28, 3
      %p115 = por %p113, %p114
      %p117 = scmp.ne.s32.totalorder %s100, %s116
      %p118 = scmp.eq.s32.totalorder %s28, 0
      %p119 = por %p117, %p118
      %s120 = ssub.s32 %s30, %s37
      %p121 = scmp.eq.s32.totalorder %s120, 0
      %s123 = sadd.s32 %s122, 1
      %s124 = scalar_select %p121, %s122, %s123
      %p127 = pneg %p121
      %p128 = scmp.eq.s32.totalorder %s22, 3
      %p129 = por %p127, %p128
      %p130 = scmp.ne.s32.totalorder %s122, %s125
      %p131 = scmp.eq.s32.totalorder %s22, 0
      %p132 = por %p130, %p131
      %p133 = scmp.ne.s32.totalorder %s122, %s125
      %p134 = scmp.eq.s32.totalorder %s27, 3
      %p135 = por %p133, %p134
      %p136 = scmp.ne.s32.totalorder %s125, %s126
      %p137 = scmp.eq.s32.totalorder %s27, 0
      %p138 = por %p136, %p137
      %p139 = scmp.ne.s32.totalorder %s125, %s126
      %p140 = scmp.eq.s32.totalorder %s28, 3
      %p141 = por %p139, %p140
      %p143 = scmp.ne.s32.totalorder %s126, %s142
      %p144 = scmp.eq.s32.totalorder %s28, 0
      %p145 = por %p143, %p144
      %s146 = ssub.s32 %s30, %s37
      %p147 = scmp.eq.s32.totalorder %s146, 0
      %s149 = sadd.s32 %s148, 1
      %s150 = scalar_select %p147, %s148, %s149
      %p153 = pneg %p147
      %p154 = scmp.eq.s32.totalorder %s22, 3
      %p155 = por %p153, %p154
      %p156 = scmp.ne.s32.totalorder %s148, %s151
      %p157 = scmp.eq.s32.totalorder %s22, 0
      %p158 = por %p156, %p157
      %p159 = scmp.ne.s32.totalorder %s148, %s151
      %p160 = scmp.eq.s32.totalorder %s27, 3
      %p161 = por %p159, %p160
      %p162 = scmp.ne.s32.totalorder %s151, %s152
      %p163 = scmp.eq.s32.totalorder %s27, 0
      %p164 = por %p162, %p163
      %p165 = scmp.ne.s32.totalorder %s151, %s152
      %p166 = scmp.eq.s32.totalorder %s28, 3
      %p167 = por %p165, %p166
      %p169 = scmp.ne.s32.totalorder %s152, %s168
      %p170 = scmp.eq.s32.totalorder %s28, 0
      %p171 = por %p169, %p170
      %s172 = ssub.s32 %s30, %s37
      %p173 = scmp.eq.s32.totalorder %s172, 0
      %s175 = sadd.s32 %s174, 1
      %s176 = scalar_select %p173, %s174, %s175
      %p179 = pneg %p173
      %p180 = scmp.eq.s32.totalorder %s22, 3
      %p181 = por %p179, %p180
      %p182 = scmp.ne.s32.totalorder %s174, %s177
      %p183 = scmp.eq.s32.totalorder %s22, 0
      %p184 = por %p182, %p183
      %p185 = scmp.ne.s32.totalorder %s174, %s177
      %p186 = scmp.eq.s32.totalorder %s27, 3
      %p187 = por %p185, %p186
      %p188 = scmp.ne.s32.totalorder %s177, %s178
      %p189 = scmp.eq.s32.totalorder %s27, 0
      %p190 = por %p188, %p189
      %p191 = scmp.ne.s32.totalorder %s177, %s178
      %p192 = scmp.eq.s32.totalorder %s28, 3
      %p193 = por %p191, %p192
      %p195 = scmp.ne.s32.totalorder %s178, %s194
      %p196 = scmp.eq.s32.totalorder %s28, 0
      %p197 = por %p195, %p196
      %s198 = ssub.s32 %s30, %s37
      %p199 = scmp.eq.s32.totalorder %s198, 0
      %s201 = sadd.s32 %s200, 1
      %s202 = scalar_select %p199, %s200, %s201
      %p205 = pneg %p199
      %p206 = scmp.eq.s32.totalorder %s22, 3
      %p207 = por %p205, %p206
      %p208 = scmp.ne.s32.totalorder %s200, %s203
      %p209 = scmp.eq.s32.totalorder %s22, 0
      %p210 = por %p208, %p209
      %p211 = scmp.ne.s32.totalorder %s200, %s203
      %p212 = scmp.eq.s32.totalorder %s27, 3
      %p213 = por %p211, %p212
      %p214 = scmp.ne.s32.totalorder %s203, %s204
      %p215 = scmp.eq.s32.totalorder %s27, 0
      %p216 = por %p214, %p215
      %p217 = scmp.ne.s32.totalorder %s203, %s204
      %p218 = scmp.eq.s32.totalorder %s28, 3
      %p219 = por %p217, %p218
      %p221 = scmp.ne.s32.totalorder %s204, %s220
      %p222 = scmp.eq.s32.totalorder %s28, 0
      %p223 = por %p221, %p222
      %s224 = ssub.s32 %s30, %s37
      %p225 = scmp.eq.s32.totalorder %s224, 0
      %s227 = sadd.s32 %s226, 1
      %s228 = scalar_select %p225, %s226, %s227
      %p231 = pneg %p225
      %p232 = scmp.eq.s32.totalorder %s22, 3
      %p233 = por %p231, %p232
      %p234 = scmp.ne.s32.totalorder %s226, %s229
      %p235 = scmp.eq.s32.totalorder %s22, 0
      %p236 = por %p234, %p235
      %p237 = scmp.ne.s32.totalorder %s226, %s229
      %p238 = scmp.eq.s32.totalorder %s27, 3
      %p239 = por %p237, %p238
      %p240 = scmp.ne.s32.totalorder %s229, %s230
      %p241 = scmp.eq.s32.totalorder %s27, 0
      %p242 = por %p240, %p241
      %p243 = scmp.ne.s32.totalorder %s229, %s230
      %p244 = scmp.eq.s32.totalorder %s28, 3
      %p245 = por %p243, %p244
      %p247 = scmp.ne.s32.totalorder %s230, %s246
      %p248 = scmp.eq.s32.totalorder %s28, 0
      %p249 = por %p247, %p248
      %s250 = ssub.s32 %s30, %s37
      %p251 = scmp.eq.s32.totalorder %s250, 0
      %s253 = sadd.s32 %s252, 1
      %s254 = scalar_select %p251, %s252, %s253
      %p257 = pneg %p251
      %p258 = scmp.eq.s32.totalorder %s22, 3
      %p259 = por %p257, %p258
      %p260 = scmp.ne.s32.totalorder %s252, %s255
      %p261 = scmp.eq.s32.totalorder %s22, 0
      %p262 = por %p260, %p261
      %p263 = scmp.ne.s32.totalorder %s252, %s255
      %p264 = scmp.eq.s32.totalorder %s27, 3
      %p265 = por %p263, %p264
      %p266 = scmp.ne.s32.totalorder %s255, %s256
      %p267 = scmp.eq.s32.totalorder %s27, 0
      %p268 = por %p266, %p267
      %p269 = scmp.ne.s32.totalorder %s255, %s256
      %p270 = scmp.eq.s32.totalorder %s28, 3
      %p271 = por %p269, %p270
      %p273 = scmp.ne.s32.totalorder %s256, %s272
      %p274 = scmp.eq.s32.totalorder %s28, 0
      %p275 = por %p273, %p274
      %s276 = ssub.s32 %s30, %s37
      %p277 = scmp.eq.s32.totalorder %s276, 0
      %s279 = sadd.s32 %s278, 1
      %s280 = scalar_select %p277, %s278, %s279
      %p283 = pneg %p277
      %p284 = scmp.eq.s32.totalorder %s22, 3
      %p285 = por %p283, %p284
      %p286 = scmp.ne.s32.totalorder %s278, %s281
      %p287 = scmp.eq.s32.totalorder %s22, 0
      %p288 = por %p286, %p287
      %p289 = scmp.ne.s32.totalorder %s278, %s281
      %p290 = scmp.eq.s32.totalorder %s27, 3
      %p291 = por %p289, %p290
      %p292 = scmp.ne.s32.totalorder %s281, %s282
      %p293 = scmp.eq.s32.totalorder %s27, 0
      %p294 = por %p292, %p293
      %p295 = scmp.ne.s32.totalorder %s281, %s282
      %p296 = scmp.eq.s32.totalorder %s28, 3
      %p297 = por %p295, %p296
      %p299 = scmp.ne.s32.totalorder %s282, %s298
      %p300 = scmp.eq.s32.totalorder %s28, 0
      %p301 = por %p299, %p300
      %s302 = ssub.s32 %s30, %s37
      %p303 = scmp.eq.s32.totalorder %s302, 0
      %s305 = sadd.s32 %s304, 1
      %s306 = scalar_select %p303, %s304, %s305
      %p309 = pneg %p303
      %p310 = scmp.eq.s32.totalorder %s22, 3
      %p311 = por %p309, %p310
      %p312 = scmp.ne.s32.totalorder %s304, %s307
      %p313 = scmp.eq.s32.totalorder %s22, 0
      %p314 = por %p312, %p313
      %p315 = scmp.ne.s32.totalorder %s304, %s307
      %p316 = scmp.eq.s32.totalorder %s27, 3
      %p317 = por %p315, %p316
      %p318 = scmp.ne.s32.totalorder %s307, %s308
      %p319 = scmp.eq.s32.totalorder %s27, 0
      %p320 = por %p318, %p319
      %p321 = scmp.ne.s32.totalorder %s307, %s308
      %p322 = scmp.eq.s32.totalorder %s28, 3
      %p323 = por %p321, %p322
      %p325 = scmp.ne.s32.totalorder %s308, %s324
      %p326 = scmp.eq.s32.totalorder %s28, 0
      %p327 = por %p325, %p326
      %s328 = ssub.s32 %s30, %s37
      %p329 = scmp.eq.s32.totalorder %s328, 0
      %s331 = sadd.s32 %s330, 1
      %s332 = scalar_select %p329, %s330, %s331
      %p335 = pneg %p329
      %p336 = scmp.eq.s32.totalorder %s22, 3
      %p337 = por %p335, %p336
      %p338 = scmp.ne.s32.totalorder %s330, %s333
      %p339 = scmp.eq.s32.totalorder %s22, 0
      %p340 = por %p338, %p339
      %p341 = scmp.ne.s32.totalorder %s330, %s333
      %p342 = scmp.eq.s32.totalorder %s27, 3
      %p343 = por %p341, %p342
      %p344 = scmp.ne.s32.totalorder %s333, %s334
      %p345 = scmp.eq.s32.totalorder %s27, 0
      %p346 = por %p344, %p345
      %p347 = scmp.ne.s32.totalorder %s333, %s334
      %p348 = scmp.eq.s32.totalorder %s28, 3
      %p349 = por %p347, %p348
      %p351 = scmp.ne.s32.totalorder %s334, %s350
      %p352 = scmp.eq.s32.totalorder %s28, 0
      %p353 = por %p351, %p352
      %s355 = sadd.s32 %s354, 1
      %p358 = scmp.eq.s32.totalorder %s22, 3
      %p359 = scmp.ne.s32.totalorder %s354, %s356
      %p360 = scmp.eq.s32.totalorder %s22, 0
      %p361 = por %p359, %p360
      %p362 = scmp.ne.s32.totalorder %s354, %s356
      %p363 = scmp.eq.s32.totalorder %s27, 3
      %p364 = por %p362, %p363
      %p365 = scmp.ne.s32.totalorder %s356, %s357
      %p366 = scmp.eq.s32.totalorder %s27, 0
      %p367 = por %p365, %p366
      %p368 = scmp.ne.s32.totalorder %s356, %s357
      %p369 = scmp.eq.s32.totalorder %s28, 3
      %p370 = por %p368, %p369
      %p372 = scmp.ne.s32.totalorder %s357, %s371
      %p373 = scmp.eq.s32.totalorder %s28, 0
      %p374 = por %p372, %p373
      %s376 = sadd.s32 %s375, 1
      %p379 = scmp.eq.s32.totalorder %s22, 3
      %p380 = scmp.ne.s32.totalorder %s375, %s377
      %p381 = scmp.eq.s32.totalorder %s22, 0
      %p382 = por %p380, %p381
      %p383 = scmp.ne.s32.totalorder %s375, %s377
      %p384 = scmp.eq.s32.totalorder %s27, 3
      %p385 = por %p383, %p384
      %p386 = scmp.ne.s32.totalorder %s377, %s378
      %p387 = scmp.eq.s32.totalorder %s27, 0
      %p388 = por %p386, %p387
      %p389 = scmp.ne.s32.totalorder %s377, %s378
      %p390 = scmp.eq.s32.totalorder %s28, 3
      %p391 = por %p389, %p390
      %p393 = scmp.ne.s32.totalorder %s378, %s392
      %p394 = scmp.eq.s32.totalorder %s28, 0
      %p395 = por %p393, %p394
      %s396 = ssub.s32 %s29, %s41
      %p397 = scmp.eq.s32.totalorder %s396, 0
      %s399 = sadd.s32 %s398, 1
      %s400 = scalar_select %p397, %s398, %s399
      %p403 = pneg %p397
      %p404 = scmp.eq.s32.totalorder %s22, 3
      %p405 = por %p403, %p404
      %p406 = scmp.ne.s32.totalorder %s398, %s401
      %p407 = scmp.eq.s32.totalorder %s22, 0
      %p408 = por %p406, %p407
      %p409 = scmp.ne.s32.totalorder %s398, %s401
      %p410 = scmp.eq.s32.totalorder %s27, 3
      %p411 = por %p409, %p410
      %p412 = scmp.ne.s32.totalorder %s401, %s402
      %p413 = scmp.eq.s32.totalorder %s27, 0
      %p414 = por %p412, %p413
      %p415 = scmp.ne.s32.totalorder %s401, %s402
      %p416 = scmp.eq.s32.totalorder %s28, 3
      %p417 = por %p415, %p416
      %p419 = scmp.ne.s32.totalorder %s402, %s418
      %p420 = scmp.eq.s32.totalorder %s28, 0
      %p421 = por %p419, %p420
      %p422 = scmp.le.s32.totalorder 1, %s22
      %p423 = scmp.lt.s32.totalorder %s22, 5
      %p424 = pnand %p422, %p423
      %p425 = pneg %p424
      // Predicated region
      $region9: #{transformer_decoder.1} parent=5 // pred_check
        _
      $region10: #{transformer_decoder.1} parent=5 // pred_check_branch
        %427 = sbr.rel (%p424) target = $region12
      $region11: #{transformer_decoder.1} parent=5 // pred_region
        %s428 = ssub.s32 %s22, 1
        // Predicated region
        $region13: #{transformer_decoder.1} parent=11 // pred_check
          %p429 = pneg %p60
        $region14: #{transformer_decoder.1} parent=11 // pred_check_branch
          %431 = sbr.rel (%p429) target = $region16
        $region15: #{transformer_decoder.1} parent=11 // pred_region
          %s432 = smul.u32 2, %s31
          %434 = vsyncadd [#allocation4], 0
          %s435 = smul.addr %s432, 8
          %s436 = scalar_lea.hbm %s0, %s435
          %s437 = sshll.u32 %s436, 4
          %s438 = int_to_ptr.hbm [resolvable:$true] %s437
          %s439 = sshll.u32 [#allocation3], 4
          %s440 = int_to_ptr.vmem [resolvable:$true] %s439
          %445 = dma.hbm_to_vmem [thread:$0]  %s438, 256, %s440, [#allocation4], 128, 128, 8
        $region16: #{transformer_decoder.1} parent=11 // pred_fallthru
          _
        // Predicated region
        $region17: #{transformer_decoder.1} parent=11 // pred_check
          %p446 = pneg %p367
        $region18: #{transformer_decoder.1} parent=11 // pred_check_branch
          %448 = sbr.rel (%p446) target = $region20
        $region19: #{transformer_decoder.1} parent=11 // pred_region
          _
        $region20: #{transformer_decoder.1} parent=11 // pred_fallthru
          _
        // Predicated region
        $region21: #{transformer_decoder.1} parent=11 // pred_check
          %p449 = pneg %p388
        $region22: #{transformer_decoder.1} parent=11 // pred_check_branch
          %451 = sbr.rel (%p449) target = $region24
        $region23: #{transformer_decoder.1} parent=11 // pred_region
          _
        $region24: #{transformer_decoder.1} parent=11 // pred_fallthru
          _
      $region12: #{transformer_decoder.1} parent=5 // pred_fallthru
        _
      %p452 = scmp.lt.s32.totalorder %s22, 4
      // Predicated region
      $region25: #{transformer_decoder.1} parent=5 // pred_check
        %p453 = pneg %p452
      $region26: #{transformer_decoder.1} parent=5 // pred_check_branch
        %455 = sbr.rel (%p453) target = $region28
      $region27: #{transformer_decoder.1} parent=5 // pred_region
        // Predicated region
        $region29: #{transformer_decoder.1} parent=27 // pred_check
          %p456 = pneg %p80
        $region30: #{transformer_decoder.1} parent=27 // pred_check_branch
          %458 = sbr.rel (%p456) target = $region32
        $region31: #{transformer_decoder.1} parent=27 // pred_region
          %p459 = scmp.lt.s32.totalorder %s30, 3
          %s460 = scalar_select %p459, %s30, 3
          %s461 = scalar_lea.vmem %s1, %s460
        $region32: #{transformer_decoder.1} parent=27 // pred_fallthru
          _
        // Predicated region
        $region33: #{transformer_decoder.1} parent=27 // pred_check
          %p462 = pneg %p106
        $region34: #{transformer_decoder.1} parent=27 // pred_check_branch
          %464 = sbr.rel (%p462) target = $region36
        $region35: #{transformer_decoder.1} parent=27 // pred_region
          %p465 = scmp.lt.s32.totalorder %s30, 3
          %s466 = scalar_select %p465, %s30, 3
          %s467 = scalar_lea.vmem %s2, %s466
        $region36: #{transformer_decoder.1} parent=27 // pred_fallthru
          _
        // Predicated region
        $region37: #{transformer_decoder.1} parent=27 // pred_check
          %p468 = pneg %p132
        $region38: #{transformer_decoder.1} parent=27 // pred_check_branch
          %470 = sbr.rel (%p468) target = $region40
        $region39: #{transformer_decoder.1} parent=27 // pred_region
          %p471 = scmp.lt.s32.totalorder %s30, 3
          %s472 = scalar_select %p471, %s30, 3
          %s473 = smul.addr %s472, 4
          %s474 = smul.addr %s473, 4
          %s475 = scalar_lea.vmem %s3, %s474
        $region40: #{transformer_decoder.1} parent=27 // pred_fallthru
          _
        // Predicated region
        $region41: #{transformer_decoder.1} parent=27 // pred_check
          %p476 = pneg %p158
        $region42: #{transformer_decoder.1} parent=27 // pred_check_branch
          %478 = sbr.rel (%p476) target = $region44
        $region43: #{transformer_decoder.1} parent=27 // pred_region
          %p479 = scmp.lt.s32.totalorder %s30, 3
          %s480 = scalar_select %p479, %s30, 3
          %s481 = smul.addr %s480, 4
          %s482 = smul.addr %s481, 4
          %s483 = scalar_lea.vmem %s4, %s482
        $region44: #{transformer_decoder.1} parent=27 // pred_fallthru
          _
        // Predicated region
        $region45: #{transformer_decoder.1} parent=27 // pred_check
          %p484 = pneg %p184
        $region46: #{transformer_decoder.1} parent=27 // pred_check_branch
          %486 = sbr.rel (%p484) target = $region48
        $region47: #{transformer_decoder.1} parent=27 // pred_region
          %p487 = scmp.lt.s32.totalorder %s30, 3
          %s488 = scalar_select %p487, %s30, 3
          %s489 = scalar_lea.vmem %s5, %s488
        $region48: #{transformer_decoder.1} parent=27 // pred_fallthru
          _
        // Predicated region
        $region49: #{transformer_decoder.1} parent=27 // pred_check
          %p490 = pneg %p210
        $region50: #{transformer_decoder.1} parent=27 // pred_check_branch
          %492 = sbr.rel (%p490) target = $region52
        $region51: #{transformer_decoder.1} parent=27 // pred_region
          %p493 = scmp.lt.s32.totalorder %s30, 3
          %s494 = scalar_select %p493, %s30, 3
          %s495 = scalar_lea.vmem %s6, %s494
        $region52: #{transformer_decoder.1} parent=27 // pred_fallthru
          _
        // Predicated region
        $region53: #{transformer_decoder.1} parent=27 // pred_check
          %p496 = pneg %p236
        $region54: #{transformer_decoder.1} parent=27 // pred_check_branch
          %498 = sbr.rel (%p496) target = $region56
        $region55: #{transformer_decoder.1} parent=27 // pred_region
          %p499 = scmp.lt.s32.totalorder %s30, 3
          %s500 = scalar_select %p499, %s30, 3
          %s501 = scalar_lea.vmem %s7, %s500
        $region56: #{transformer_decoder.1} parent=27 // pred_fallthru
          _
        // Predicated region
        $region57: #{transformer_decoder.1} parent=27 // pred_check
          %p502 = pneg %p262
        $region58: #{transformer_decoder.1} parent=27 // pred_check_branch
          %504 = sbr.rel (%p502) target = $region60
        $region59: #{transformer_decoder.1} parent=27 // pred_region
          %p505 = scmp.lt.s32.totalorder %s30, 3
          %s506 = scalar_select %p505, %s30, 3
          %s507 = smul.addr %s506, 4
          %s508 = smul.addr %s507, 4
          %s509 = scalar_lea.vmem %s8, %s508
        $region60: #{transformer_decoder.1} parent=27 // pred_fallthru
          _
        // Predicated region
        $region61: #{transformer_decoder.1} parent=27 // pred_check
          %p510 = pneg %p288
        $region62: #{transformer_decoder.1} parent=27 // pred_check_branch
          %512 = sbr.rel (%p510) target = $region64
        $region63: #{transformer_decoder.1} parent=27 // pred_region
          %p513 = scmp.lt.s32.totalorder %s30, 3
          %s514 = scalar_select %p513, %s30, 3
          %s515 = scalar_lea.vmem %s9, %s514
        $region64: #{transformer_decoder.1} parent=27 // pred_fallthru
          _
        // Predicated region
        $region65: #{transformer_decoder.1} parent=27 // pred_check
          %p516 = pneg %p314
        $region66: #{transformer_decoder.1} parent=27 // pred_check_branch
          %518 = sbr.rel (%p516) target = $region68
        $region67: #{transformer_decoder.1} parent=27 // pred_region
          %p519 = scmp.lt.s32.totalorder %s30, 3
          %s520 = scalar_select %p519, %s30, 3
          %s521 = smul.addr %s520, 16
          %s522 = smul.addr %s521, 4
          %s523 = scalar_lea.vmem %s10, %s522
        $region68: #{transformer_decoder.1} parent=27 // pred_fallthru
          _
        // Predicated region
        $region69: #{transformer_decoder.1} parent=27 // pred_check
          %p524 = pneg %p340
        $region70: #{transformer_decoder.1} parent=27 // pred_check_branch
          %526 = sbr.rel (%p524) target = $region72
        $region71: #{transformer_decoder.1} parent=27 // pred_region
          %p527 = scmp.lt.s32.totalorder %s30, 3
          %s528 = scalar_select %p527, %s30, 3
          %s529 = scalar_lea.vmem %s11, %s528
        $region72: #{transformer_decoder.1} parent=27 // pred_fallthru
          _
      $region28: #{transformer_decoder.1} parent=5 // pred_fallthru
        _
      %p530 = scmp.le.s32.totalorder 1, %s22
      %p531 = scmp.lt.s32.totalorder %s22, 5
      %p532 = pnand %p530, %p531
      %p533 = pneg %p532
      // Predicated region
      $region73: #{transformer_decoder.1} parent=5 // pred_check
        _
      $region74: #{transformer_decoder.1} parent=5 // pred_check_branch
        %535 = sbr.rel (%p532) target = $region76
      $region75: #{transformer_decoder.1} parent=5 // pred_region
        %s536 = ssub.s32 %s22, 1
        // Predicated region
        $region77: #{transformer_decoder.1} parent=75 // pred_check
          %p537 = pneg %p60
        $region78: #{transformer_decoder.1} parent=75 // pred_check_branch
          %539 = sbr.rel (%p537) target = $region80
        $region79: #{transformer_decoder.1} parent=75 // pred_region
          %541 = dma.done [#allocation4], 256
        $region80: #{transformer_decoder.1} parent=75 // pred_fallthru
          _
        %p542 = pneg %p60
        %p543 = pneg %p57
        %p544 = scmp.lt.s32.totalorder %s32, 3
        %s545 = scalar_select %p544, %s32, 3
        %s546 = scalar_lea.vmem %s1, %s545
        %p547 = pneg %p86
        %p548 = pneg %p83
        %p549 = scmp.lt.s32.totalorder %s32, 3
        %s550 = scalar_select %p549, %s32, 3
        %s551 = scalar_lea.vmem %s2, %s550
        %p552 = pneg %p112
        %p553 = pneg %p109
        %p554 = scmp.lt.s32.totalorder %s32, 3
        %s555 = scalar_select %p554, %s32, 3
        %s556 = smul.addr %s555, 4
        %s557 = smul.addr %s556, 4
        %s558 = scalar_lea.vmem %s3, %s557
        %p559 = pneg %p138
        %p560 = pneg %p135
        %p561 = scmp.lt.s32.totalorder %s32, 3
        %s562 = scalar_select %p561, %s32, 3
        %s563 = smul.addr %s562, 4
        %s564 = smul.addr %s563, 4
        %s565 = scalar_lea.vmem %s4, %s564
        %p566 = pneg %p164
        %p567 = pneg %p161
        %p568 = scmp.lt.s32.totalorder %s32, 3
        %s569 = scalar_select %p568, %s32, 3
        %s570 = scalar_lea.vmem %s5, %s569
        %p571 = pneg %p190
        %p572 = pneg %p187
        %p573 = scmp.lt.s32.totalorder %s32, 3
        %s574 = scalar_select %p573, %s32, 3
        %s575 = scalar_lea.vmem %s6, %s574
        %p576 = pneg %p216
        %p577 = pneg %p213
        %p578 = scmp.lt.s32.totalorder %s32, 3
        %s579 = scalar_select %p578, %s32, 3
        %s580 = scalar_lea.vmem %s7, %s579
        %p581 = pneg %p242
        %p582 = pneg %p239
        %p583 = scmp.lt.s32.totalorder %s32, 3
        %s584 = scalar_select %p583, %s32, 3
        %s585 = smul.addr %s584, 4
        %s586 = smul.addr %s585, 4
        %s587 = scalar_lea.vmem %s8, %s586
        %p588 = pneg %p268
        %p589 = pneg %p265
        %p590 = scmp.lt.s32.totalorder %s32, 3
        %s591 = scalar_select %p590, %s32, 3
        %s592 = scalar_lea.vmem %s9, %s591
        %p593 = pneg %p294
        %p594 = pneg %p291
        %p595 = scmp.lt.s32.totalorder %s32, 3
        %s596 = scalar_select %p595, %s32, 3
        %s597 = smul.addr %s596, 16
        %s598 = smul.addr %s597, 4
        %s599 = scalar_lea.vmem %s10, %s598
        %p600 = pneg %p320
        %p601 = pneg %p317
        %p602 = scmp.lt.s32.totalorder %s32, 3
        %s603 = scalar_select %p602, %s32, 3
        %s604 = scalar_lea.vmem %s11, %s603
        %p605 = pneg %p346
        %p606 = pneg %p343
        %p607 = pneg %p367
        %p608 = pneg %p364
        %p609 = pneg %p388
        %p610 = pneg %p385
        %p611 = pneg %p414
        %p612 = pneg %p411
        %s613 = smul.u32 2, %s31
        %p614 = scmp.lt.s32.totalorder %s32, 3
        %s615 = scalar_select %p614, %s32, 3
        %s616 = scalar_lea.vmem %s1, %s615
        %p617 = scmp.lt.s32.totalorder %s32, 3
        %s618 = scalar_select %p617, %s32, 3
        %s619 = scalar_lea.vmem %s2, %s618
        %p620 = scmp.lt.s32.totalorder %s32, 3
        %s621 = scalar_select %p620, %s32, 3
        %s622 = smul.addr %s621, 4
        %s623 = smul.addr %s622, 4
        %s624 = scalar_lea.vmem %s3, %s623
        %p625 = scmp.lt.s32.totalorder %s32, 3
        %s626 = scalar_select %p625, %s32, 3
        %s627 = smul.addr %s626, 4
        %s628 = smul.addr %s627, 4
        %s629 = scalar_lea.vmem %s4, %s628
        %p630 = scmp.lt.s32.totalorder %s32, 3
        %s631 = scalar_select %p630, %s32, 3
        %s632 = scalar_lea.vmem %s5, %s631
        %p633 = scmp.lt.s32.totalorder %s32, 3
        %s634 = scalar_select %p633, %s32, 3
        %s635 = scalar_lea.vmem %s6, %s634
        %p636 = scmp.lt.s32.totalorder %s32, 3
        %s637 = scalar_select %p636, %s32, 3
        %s638 = scalar_lea.vmem %s7, %s637
        %p639 = scmp.lt.s32.totalorder %s32, 3
        %s640 = scalar_select %p639, %s32, 3
        %s641 = smul.addr %s640, 4
        %s642 = smul.addr %s641, 4
        %s643 = scalar_lea.vmem %s8, %s642
        %p644 = scmp.lt.s32.totalorder %s32, 3
        %s645 = scalar_select %p644, %s32, 3
        %s646 = scalar_lea.vmem %s9, %s645
        %p647 = scmp.lt.s32.totalorder %s32, 3
        %s648 = scalar_select %p647, %s32, 3
        %s649 = smul.addr %s648, 16
        %s650 = smul.addr %s649, 4
        %s651 = scalar_lea.vmem %s10, %s650
        %p652 = scmp.lt.s32.totalorder %s32, 3
        %s653 = scalar_select %p652, %s32, 3
        %s654 = scalar_lea.vmem %s11, %s653
        %s655 = smul.u32 2, %s31
        %p657 = scmp.eq.s32.totalorder %s32, 0
        // Predicated region
        $region81: #{transformer_decoder.1} parent=75 // pred_check
          %p658 = pneg %p657
        $region82: #{transformer_decoder.1} parent=75 // pred_check_branch
          %660 = sbr.rel (%p658) target = $region84
        $region83: #{transformer_decoder.1} parent=75 // pred_region
          %v661 = vld [vmem:[#allocation3] sm:$0xff]
          %v662 = vld [vmem:[#allocation3 + $0x8] sm:$0xff]
          %vm663 = vcmask 261120
          %664 = vst.msk [vmem:[#allocation2] sm:$0xff] %vm663, %v661
          %665 = vst.msk [vmem:[#allocation2 + $0x8] sm:$0xff] %vm663, %v662
        $region84: #{transformer_decoder.1} parent=75 // pred_fallthru
          _
        %v666 = vld [vmem:[#allocation2] sm:$0xff]
        %v667 = vld [vmem:[#allocation2 + $0x8] sm:$0xff]
        %v668 = vld [vmem:[%s616] sm:$0x1]
        %v669 = vld [vmem:[%s619] sm:$0x1]
        %vm670 = vcmask 261120
        %v671 = vsel %vm670, %v666, 0.0
        %672 = vadd.xlane.f32.xlu0 %v671
        %v673 = vpop.xlane.xlu0 %672
        %v674 = vsel %vm670, %v667, 0.0
        %675 = vadd.xlane.f32.xlu0 %v674
        %v676 = vpop.xlane.xlu0 %675
        %v677 = vrcp.pop 32.0
        %v678 = vmul.f32 32.0, %v677
        %v679 = vsub.f32 1.0, %v678
        %v680 = vmul.f32 %v677, %v679
        %v681 = vadd.f32 %v677, %v680
        %vm682 = vweird.f32 %v677
        %v683 = vsel %vm682, %v677, %v681
        %v684 = vmul.f32 %v673, %v683
        %v685 = vmul.f32 %v676, %v683
        %v686 = vsub.f32 %v666, %v684
        %v687 = vsub.f32 %v667, %v685
        %v688 = vmul.f32 %v686, %v686
        %v689 = vmul.f32 %v687, %v687
        %v690 = vsel %vm670, %v688, 0.0
        %691 = vadd.xlane.f32.xlu0 %v690
        %v692 = vpop.xlane.xlu0 %691
        %v693 = vsel %vm670, %v689, 0.0
        %694 = vadd.xlane.f32.xlu0 %v693
        %v695 = vpop.xlane.xlu0 %694
        %v696 = vmul.f32 %v692, %v683
        %v697 = vmul.f32 %v695, %v683
        %v698 = vadd.f32 %v696, 1e-05
        %v699 = vadd.f32 %v697, 1e-05
        %v700 = vrsqrt.pop %v698
        %v701 = vmul.f32 %v700, %v698
        %v702 = vmul.f32 %v701, %v700
        %v703 = vmul.f32 0.5, %v702
        %v704 = vsub.f32 1.5, %v703
        %v705 = vmul.f32 %v700, %v704
        %vm706 = vweird.f32 %v698
        %vm707 = vweird.f32 %v700
        %vm708 = vmor %vm706, %vm707
        %v709 = vsel %vm708, %v700, %v705
        %v710 = vrsqrt.pop %v699
        %v711 = vmul.f32 %v710, %v699
        %v712 = vmul.f32 %v711, %v710
        %v713 = vmul.f32 0.5, %v712
        %v714 = vsub.f32 1.5, %v713
        %v715 = vmul.f32 %v710, %v714
        %vm716 = vweird.f32 %v699
        %vm717 = vweird.f32 %v710
        %vm718 = vmor %vm716, %vm717
        %v719 = vsel %vm718, %v710, %v715
        %v720 = vmul.f32 %v686, %v709
        %v721 = vmul.f32 %v687, %v719
        %v723 = vperm.slane %v668, 0
        %v725 = vmul.f32 %v720, %v723
        %v726 = vmul.f32 %v721, %v723
        %v728 = vperm.slane %v669, 0
        %v730 = vadd.f32 %v725, %v728
        %v731 = vadd.f32 %v726, %v728
        %v732 = vpack.c.bf16 %v731, %v730
        %v733 = vld [vmem:[%s624] sm:$0xf]
        %v734 = vld [vmem:[%s624 + $0x4] sm:$0xf]
        %v735 = vld [vmem:[%s624 + $0x8] sm:$0xf]
        %v736 = vld [vmem:[%s624 + $0xc] sm:$0xf]
        %v741 = vunpack.c.l.b16 %v733
        %v742 = vunpack.c.l.b16 %v734
        %v743 = vunpack.c.l.b16 %v735
        %v744 = vunpack.c.l.b16 %v736
        %v745 = vpack.c.b16 %v742, %v741
        %v746 = vpack.c.b16 %v744, %v743
        %v750 = vsel %vm670, %v732, 0
        %752 = vmatpush.bf16.msra.mxu0 0
        %753 = vmatpush.bf16.msra.mxu0 0
        %754 = vmatpush.bf16.msra.mxu0 0
        %755 = vmatpush.bf16.msra.mxu0 0
        %756 = vmatpush.bf16.msra.mxu0 0
        %757 = vmatpush.bf16.msra.mxu0 0
        %758 = vmatpush.bf16.msra.mxu0 %v746
        %759 = vmatpush.bf16.msra.mxu0 %v745
        %760 = vmatmul.bf16.gmra.mxu0 %v750
        %v761 = vpop.f32.mrf.mxu0
        %v762 = vadd.f32 0.0, %v761
        %v763 = vpop.f32.mrf.mxu0
        %v764 = vadd.f32 0.0, %v763
        %765 = vdwg.mxu0
        %v766 = vpack.c.bf16 %v762, %v762
        %v767 = vpack.c.bf16 %v764, %v764
        %v769 = vunpack.c.l.b16 %v766
        %v770 = vpack.c.b16 %v769, %v769
        %771 = vrot.lane.b32.xlu0 %v770, 96
        %v772 = vpop.permute.xlu0 %771
        %vm773 = vcmask 64512
        %v775 = vsel %vm773, %v766, 0
        %v778 = vsel %vm773, %v772, 0
        %780 = vmatpush.bf16.xpose.msra.mxu0 0
        %781 = vmatpush.bf16.xpose.msra.mxu0 0
        %782 = vmatpush.bf16.xpose.msra.mxu0 0
        %783 = vmatpush.bf16.xpose.msra.mxu0 0
        %784 = vmatpush.bf16.xpose.msra.mxu0 0
        %785 = vmatpush.bf16.xpose.msra.mxu0 0
        %786 = vmatpush.bf16.xpose.msra.mxu0 0
        %787 = vmatpush.bf16.xpose.msra.mxu0 %v778
        %788 = vmatmul.bf16.gmra.mxu0 %v775
        %v789 = vpop.f32.mrf.mxu0
        %v790 = vadd.f32 0.0, %v789
        %v791 = vpop.f32.mrf.mxu0
        %792 = vdwg.mxu0
        %v794 = vunpack.c.l.b16 %v767
        %v795 = vpack.c.b16 %v794, %v794
        %796 = vrot.lane.b32.xlu0 %v795, 96
        %v797 = vpop.permute.xlu0 %796
        %v799 = vsel %vm773, %v767, 0
        %v802 = vsel %vm773, %v797, 0
        %804 = vmatpush.bf16.xpose.msra.mxu0 0
        %805 = vmatpush.bf16.xpose.msra.mxu0 0
        %806 = vmatpush.bf16.xpose.msra.mxu0 0
        %807 = vmatpush.bf16.xpose.msra.mxu0 0
        %808 = vmatpush.bf16.xpose.msra.mxu0 0
        %809 = vmatpush.bf16.xpose.msra.mxu0 0
        %810 = vmatpush.bf16.xpose.msra.mxu0 0
        %811 = vmatpush.bf16.xpose.msra.mxu0 %v802
        %812 = vmatmul.bf16.gmra.mxu0 %v799
        %v813 = vpop.f32.mrf.mxu0
        %v814 = vadd.f32 0.0, %v813
        %v815 = vpop.f32.mrf.mxu0
        %816 = vdwg.mxu0
        %v817 = vsel %vm773, %v790, -inf
        %818 = vmax.xlane.f32.xlu0 %v817
        %v819 = vpop.xlane.xlu0 %818
        %v820 = vsel %vm773, %v814, -inf
        %821 = vmax.xlane.f32.xlu0 %v820
        %v822 = vpop.xlane.xlu0 %821
        %v823 = vsub.f32 %v790, %v819
        %v824 = vsub.f32 %v814, %v822
        %v825 = vmul.f32 %v823, 1.442695
        %v826 = vpow.pop %v825
        %v827 = vmul.f32 %v824, 1.442695
        %v828 = vpow.pop %v827
        %v829 = vsel %vm773, %v826, 0.0
        %830 = vadd.xlane.f32.xlu0 %v829
        %v831 = vpop.xlane.xlu0 %830
        %v832 = vsel %vm773, %v828, 0.0
        %833 = vadd.xlane.f32.xlu0 %v832
        %v834 = vpop.xlane.xlu0 %833
        %v835 = vrcp.pop %v831
        %v836 = vrcp.pop %v834
        %v837 = vmul.f32 %v826, %v835
        %v838 = vmul.f32 %v828, %v836
        %v839 = vpack.c.bf16 %v837, %v837
        %v840 = vpack.c.bf16 %v838, %v838
        %841 = vrot.lane.b32.xlu0 %v770, 64
        %v842 = vpop.permute.xlu0 %841
        %v844 = vsel %vm773, %v839, 0
        %vm846 = vcmask 1043456
        %v848 = vsel %vm846, %v842, 0
        %850 = vmatpush.bf16.msra.mxu0 0
        %851 = vmatpush.bf16.msra.mxu0 0
        %852 = vmatpush.bf16.msra.mxu0 0
        %853 = vmatpush.bf16.msra.mxu0 0
        %854 = vmatpush.bf16.msra.mxu0 0
        %855 = vmatpush.bf16.msra.mxu0 0
        %856 = vmatpush.bf16.msra.mxu0 0
        %857 = vmatpush.bf16.msra.mxu0 %v848
        %858 = vmatmul.bf16.gmra.mxu0 %v844
        %v859 = vpop.f32.mrf.mxu0
        %v860 = vadd.f32 0.0, %v859
        %v861 = vpop.f32.mrf.mxu0
        %862 = vdwg.mxu0
        %863 = vrot.lane.b32.xlu0 %v795, 64
        %v864 = vpop.permute.xlu0 %863
        %v866 = vsel %vm773, %v840, 0
        %v869 = vsel %vm846, %v864, 0
        %871 = vmatpush.bf16.msra.mxu0 0
        %872 = vmatpush.bf16.msra.mxu0 0
        %873 = vmatpush.bf16.msra.mxu0 0
        %874 = vmatpush.bf16.msra.mxu0 0
        %875 = vmatpush.bf16.msra.mxu0 0
        %876 = vmatpush.bf16.msra.mxu0 0
        %877 = vmatpush.bf16.msra.mxu0 0
        %878 = vmatpush.bf16.msra.mxu0 %v869
        %879 = vmatmul.bf16.gmra.mxu0 %v866
        %v880 = vpop.f32.mrf.mxu0
        %v881 = vadd.f32 0.0, %v880
        %v882 = vpop.f32.mrf.mxu0
        %883 = vdwg.mxu0
        %v884 = vpack.c.bf16 %v860, %v860
        %v885 = vpack.c.bf16 %v881, %v881
        %886 = vrot.lane.b32.xlu0 %v770, 120
        %v887 = vpop.permute.xlu0 %886
        %888 = vrot.lane.b32.xlu0 %v770, 88
        %v889 = vpop.permute.xlu0 %888
        %v891 = vsel %vm773, %v887, 0
        %v894 = vsel %vm773, %v889, 0
        %896 = vmatpush.bf16.xpose.msra.mxu0 0
        %897 = vmatpush.bf16.xpose.msra.mxu0 0
        %898 = vmatpush.bf16.xpose.msra.mxu0 0
        %899 = vmatpush.bf16.xpose.msra.mxu0 0
        %900 = vmatpush.bf16.xpose.msra.mxu0 0
        %901 = vmatpush.bf16.xpose.msra.mxu0 0
        %902 = vmatpush.bf16.xpose.msra.mxu0 0
        %903 = vmatpush.bf16.xpose.msra.mxu0 %v894
        %904 = vmatmul.bf16.gmra.mxu0 %v891
        %v905 = vpop.f32.mrf.mxu0
        %v906 = vadd.f32 0.0, %v905
        %v907 = vpop.f32.mrf.mxu0
        %908 = vdwg.mxu0
        %909 = vrot.lane.b32.xlu0 %v795, 120
        %v910 = vpop.permute.xlu0 %909
        %911 = vrot.lane.b32.xlu0 %v795, 88
        %v912 = vpop.permute.xlu0 %911
        %v914 = vsel %vm773, %v910, 0
        %v917 = vsel %vm773, %v912, 0
        %919 = vmatpush.bf16.xpose.msra.mxu0 0
        %920 = vmatpush.bf16.xpose.msra.mxu0 0
        %921 = vmatpush.bf16.xpose.msra.mxu0 0
        %922 = vmatpush.bf16.xpose.msra.mxu0 0
        %923 = vmatpush.bf16.xpose.msra.mxu0 0
        %924 = vmatpush.bf16.xpose.msra.mxu0 0
        %925 = vmatpush.bf16.xpose.msra.mxu0 0
        %926 = vmatpush.bf16.xpose.msra.mxu0 %v917
        %927 = vmatmul.bf16.gmra.mxu0 %v914
        %v928 = vpop.f32.mrf.mxu0
        %v929 = vadd.f32 0.0, %v928
        %v930 = vpop.f32.mrf.mxu0
        %931 = vdwg.mxu0
        %v932 = vsel %vm773, %v906, -inf
        %933 = vmax.xlane.f32.xlu0 %v932
        %v934 = vpop.xlane.xlu0 %933
        %v935 = vsel %vm773, %v929, -inf
        %936 = vmax.xlane.f32.xlu0 %v935
        %v937 = vpop.xlane.xlu0 %936
        %v938 = vsub.f32 %v906, %v934
        %v939 = vsub.f32 %v929, %v937
        %v940 = vmul.f32 %v938, 1.442695
        %v941 = vpow.pop %v940
        %v942 = vmul.f32 %v939, 1.442695
        %v943 = vpow.pop %v942
        %v944 = vsel %vm773, %v941, 0.0
        %945 = vadd.xlane.f32.xlu0 %v944
        %v946 = vpop.xlane.xlu0 %945
        %v947 = vsel %vm773, %v943, 0.0
        %948 = vadd.xlane.f32.xlu0 %v947
        %v949 = vpop.xlane.xlu0 %948
        %v950 = vrcp.pop %v946
        %v951 = vrcp.pop %v949
        %v952 = vmul.f32 %v941, %v950
        %v953 = vmul.f32 %v943, %v951
        %v954 = vpack.c.bf16 %v952, %v952
        %v955 = vpack.c.bf16 %v953, %v953
        %956 = vrot.lane.b32.xlu0 %v770, 56
        %v957 = vpop.permute.xlu0 %956
        %v959 = vsel %vm773, %v954, 0
        %v962 = vsel %vm846, %v957, 0
        %964 = vmatpush.bf16.msra.mxu0 0
        %965 = vmatpush.bf16.msra.mxu0 0
        %966 = vmatpush.bf16.msra.mxu0 0
        %967 = vmatpush.bf16.msra.mxu0 0
        %968 = vmatpush.bf16.msra.mxu0 0
        %969 = vmatpush.bf16.msra.mxu0 0
        %970 = vmatpush.bf16.msra.mxu0 0
        %971 = vmatpush.bf16.msra.mxu0 %v962
        %972 = vmatmul.bf16.gmra.mxu0 %v959
        %v973 = vpop.f32.mrf.mxu0
        %v974 = vadd.f32 0.0, %v973
        %v975 = vpop.f32.mrf.mxu0
        %976 = vdwg.mxu0
        %977 = vrot.lane.b32.xlu0 %v795, 56
        %v978 = vpop.permute.xlu0 %977
        %v980 = vsel %vm773, %v955, 0
        %v983 = vsel %vm846, %v978, 0
        %985 = vmatpush.bf16.msra.mxu0 0
        %986 = vmatpush.bf16.msra.mxu0 0
        %987 = vmatpush.bf16.msra.mxu0 0
        %988 = vmatpush.bf16.msra.mxu0 0
        %989 = vmatpush.bf16.msra.mxu0 0
        %990 = vmatpush.bf16.msra.mxu0 0
        %991 = vmatpush.bf16.msra.mxu0 0
        %992 = vmatpush.bf16.msra.mxu0 %v983
        %993 = vmatmul.bf16.gmra.mxu0 %v980
        %v994 = vpop.f32.mrf.mxu0
        %v995 = vadd.f32 0.0, %v994
        %v996 = vpop.f32.mrf.mxu0
        %997 = vdwg.mxu0
        %v998 = vpack.c.bf16 %v974, %v974
        %v999 = vpack.c.bf16 %v995, %v995
        %1000 = vrot.lane.b32.xlu0 %v770, 112
        %v1001 = vpop.permute.xlu0 %1000
        %1002 = vrot.lane.b32.xlu0 %v770, 80
        %v1003 = vpop.permute.xlu0 %1002
        %v1005 = vsel %vm773, %v1001, 0
        %v1008 = vsel %vm773, %v1003, 0
        %1010 = vmatpush.bf16.xpose.msra.mxu0 0
        %1011 = vmatpush.bf16.xpose.msra.mxu0 0
        %1012 = vmatpush.bf16.xpose.msra.mxu0 0
        %1013 = vmatpush.bf16.xpose.msra.mxu0 0
        %1014 = vmatpush.bf16.xpose.msra.mxu0 0
        %1015 = vmatpush.bf16.xpose.msra.mxu0 0
        %1016 = vmatpush.bf16.xpose.msra.mxu0 0
        %1017 = vmatpush.bf16.xpose.msra.mxu0 %v1008
        %1018 = vmatmul.bf16.gmra.mxu0 %v1005
        %v1019 = vpop.f32.mrf.mxu0
        %v1020 = vadd.f32 0.0, %v1019
        %v1021 = vpop.f32.mrf.mxu0
        %1022 = vdwg.mxu0
        %1023 = vrot.lane.b32.xlu0 %v795, 112
        %v1024 = vpop.permute.xlu0 %1023
        %1025 = vrot.lane.b32.xlu0 %v795, 80
        %v1026 = vpop.permute.xlu0 %1025
        %v1028 = vsel %vm773, %v1024, 0
        %v1031 = vsel %vm773, %v1026, 0
        %1033 = vmatpush.bf16.xpose.msra.mxu0 0
        %1034 = vmatpush.bf16.xpose.msra.mxu0 0
        %1035 = vmatpush.bf16.xpose.msra.mxu0 0
        %1036 = vmatpush.bf16.xpose.msra.mxu0 0
        %1037 = vmatpush.bf16.xpose.msra.mxu0 0
        %1038 = vmatpush.bf16.xpose.msra.mxu0 0
        %1039 = vmatpush.bf16.xpose.msra.mxu0 0
        %1040 = vmatpush.bf16.xpose.msra.mxu0 %v1031
        %1041 = vmatmul.bf16.gmra.mxu0 %v1028
        %v1042 = vpop.f32.mrf.mxu0
        %v1043 = vadd.f32 0.0, %v1042
        %v1044 = vpop.f32.mrf.mxu0
        %1045 = vdwg.mxu0
        %v1046 = vsel %vm773, %v1020, -inf
        %1047 = vmax.xlane.f32.xlu0 %v1046
        %v1048 = vpop.xlane.xlu0 %1047
        %v1049 = vsel %vm773, %v1043, -inf
        %1050 = vmax.xlane.f32.xlu0 %v1049
        %v1051 = vpop.xlane.xlu0 %1050
        %v1052 = vsub.f32 %v1020, %v1048
        %v1053 = vsub.f32 %v1043, %v1051
        %v1054 = vmul.f32 %v1052, 1.442695
        %v1055 = vpow.pop %v1054
        %v1056 = vmul.f32 %v1053, 1.442695
        %v1057 = vpow.pop %v1056
        %v1058 = vsel %vm773, %v1055, 0.0
        %1059 = vadd.xlane.f32.xlu0 %v1058
        %v1060 = vpop.xlane.xlu0 %1059
        %v1061 = vsel %vm773, %v1057, 0.0
        %1062 = vadd.xlane.f32.xlu0 %v1061
        %v1063 = vpop.xlane.xlu0 %1062
        %v1064 = vrcp.pop %v1060
        %v1065 = vrcp.pop %v1063
        %v1066 = vmul.f32 %v1055, %v1064
        %v1067 = vmul.f32 %v1057, %v1065
        %v1068 = vpack.c.bf16 %v1066, %v1066
        %v1069 = vpack.c.bf16 %v1067, %v1067
        %1070 = vrot.lane.b32.xlu0 %v770, 48
        %v1071 = vpop.permute.xlu0 %1070
        %v1073 = vsel %vm773, %v1068, 0
        %v1076 = vsel %vm846, %v1071, 0
        %1078 = vmatpush.bf16.msra.mxu0 0
        %1079 = vmatpush.bf16.msra.mxu0 0
        %1080 = vmatpush.bf16.msra.mxu0 0
        %1081 = vmatpush.bf16.msra.mxu0 0
        %1082 = vmatpush.bf16.msra.mxu0 0
        %1083 = vmatpush.bf16.msra.mxu0 0
        %1084 = vmatpush.bf16.msra.mxu0 0
        %1085 = vmatpush.bf16.msra.mxu0 %v1076
        %1086 = vmatmul.bf16.gmra.mxu0 %v1073
        %v1087 = vpop.f32.mrf.mxu0
        %v1088 = vadd.f32 0.0, %v1087
        %v1089 = vpop.f32.mrf.mxu0
        %1090 = vdwg.mxu0
        %1091 = vrot.lane.b32.xlu0 %v795, 48
        %v1092 = vpop.permute.xlu0 %1091
        %v1094 = vsel %vm773, %v1069, 0
        %v1097 = vsel %vm846, %v1092, 0
        %1099 = vmatpush.bf16.msra.mxu0 0
        %1100 = vmatpush.bf16.msra.mxu0 0
        %1101 = vmatpush.bf16.msra.mxu0 0
        %1102 = vmatpush.bf16.msra.mxu0 0
        %1103 = vmatpush.bf16.msra.mxu0 0
        %1104 = vmatpush.bf16.msra.mxu0 0
        %1105 = vmatpush.bf16.msra.mxu0 0
        %1106 = vmatpush.bf16.msra.mxu0 %v1097
        %1107 = vmatmul.bf16.gmra.mxu0 %v1094
        %v1108 = vpop.f32.mrf.mxu0
        %v1109 = vadd.f32 0.0, %v1108
        %v1110 = vpop.f32.mrf.mxu0
        %1111 = vdwg.mxu0
        %v1112 = vpack.c.bf16 %v1088, %v1088
        %v1113 = vpack.c.bf16 %v1109, %v1109
        %1114 = vrot.lane.b32.xlu0 %v770, 104
        %v1115 = vpop.permute.xlu0 %1114
        %1116 = vrot.lane.b32.xlu0 %v770, 72
        %v1117 = vpop.permute.xlu0 %1116
        %v1119 = vsel %vm773, %v1115, 0
        %v1122 = vsel %vm773, %v1117, 0
        %1124 = vmatpush.bf16.xpose.msra.mxu0 0
        %1125 = vmatpush.bf16.xpose.msra.mxu0 0
        %1126 = vmatpush.bf16.xpose.msra.mxu0 0
        %1127 = vmatpush.bf16.xpose.msra.mxu0 0
        %1128 = vmatpush.bf16.xpose.msra.mxu0 0
        %1129 = vmatpush.bf16.xpose.msra.mxu0 0
        %1130 = vmatpush.bf16.xpose.msra.mxu0 0
        %1131 = vmatpush.bf16.xpose.msra.mxu0 %v1122
        %1132 = vmatmul.bf16.gmra.mxu0 %v1119
        %v1133 = vpop.f32.mrf.mxu0
        %v1134 = vadd.f32 0.0, %v1133
        %v1135 = vpop.f32.mrf.mxu0
        %1136 = vdwg.mxu0
        %1137 = vrot.lane.b32.xlu0 %v795, 104
        %v1138 = vpop.permute.xlu0 %1137
        %1139 = vrot.lane.b32.xlu0 %v795, 72
        %v1140 = vpop.permute.xlu0 %1139
        %v1142 = vsel %vm773, %v1138, 0
        %v1145 = vsel %vm773, %v1140, 0
        %1147 = vmatpush.bf16.xpose.msra.mxu0 0
        %1148 = vmatpush.bf16.xpose.msra.mxu0 0
        %1149 = vmatpush.bf16.xpose.msra.mxu0 0
        %1150 = vmatpush.bf16.xpose.msra.mxu0 0
        %1151 = vmatpush.bf16.xpose.msra.mxu0 0
        %1152 = vmatpush.bf16.xpose.msra.mxu0 0
        %1153 = vmatpush.bf16.xpose.msra.mxu0 0
        %1154 = vmatpush.bf16.xpose.msra.mxu0 %v1145
        %1155 = vmatmul.bf16.gmra.mxu0 %v1142
        %v1156 = vpop.f32.mrf.mxu0
        %v1157 = vadd.f32 0.0, %v1156
        %v1158 = vpop.f32.mrf.mxu0
        %1159 = vdwg.mxu0
        %v1160 = vsel %vm773, %v1134, -inf
        %1161 = vmax.xlane.f32.xlu0 %v1160
        %v1162 = vpop.xlane.xlu0 %1161
        %v1163 = vsel %vm773, %v1157, -inf
        %1164 = vmax.xlane.f32.xlu0 %v1163
        %v1165 = vpop.xlane.xlu0 %1164
        %v1166 = vsub.f32 %v1134, %v1162
        %v1167 = vsub.f32 %v1157, %v1165
        %v1168 = vmul.f32 %v1166, 1.442695
        %v1169 = vpow.pop %v1168
        %v1170 = vmul.f32 %v1167, 1.442695
        %v1171 = vpow.pop %v1170
        %v1172 = vsel %vm773, %v1169, 0.0
        %1173 = vadd.xlane.f32.xlu0 %v1172
        %v1174 = vpop.xlane.xlu0 %1173
        %v1175 = vsel %vm773, %v1171, 0.0
        %1176 = vadd.xlane.f32.xlu0 %v1175
        %v1177 = vpop.xlane.xlu0 %1176
        %v1178 = vrcp.pop %v1174
        %v1179 = vrcp.pop %v1177
        %v1180 = vmul.f32 %v1169, %v1178
        %v1181 = vmul.f32 %v1171, %v1179
        %v1182 = vpack.c.bf16 %v1180, %v1180
        %v1183 = vpack.c.bf16 %v1181, %v1181
        %1184 = vrot.lane.b32.xlu0 %v770, 40
        %v1185 = vpop.permute.xlu0 %1184
        %v1187 = vsel %vm773, %v1182, 0
        %v1190 = vsel %vm846, %v1185, 0
        %1192 = vmatpush.bf16.msra.mxu0 0
        %1193 = vmatpush.bf16.msra.mxu0 0
        %1194 = vmatpush.bf16.msra.mxu0 0
        %1195 = vmatpush.bf16.msra.mxu0 0
        %1196 = vmatpush.bf16.msra.mxu0 0
        %1197 = vmatpush.bf16.msra.mxu0 0
        %1198 = vmatpush.bf16.msra.mxu0 0
        %1199 = vmatpush.bf16.msra.mxu0 %v1190
        %1200 = vmatmul.bf16.gmra.mxu0 %v1187
        %v1201 = vpop.f32.mrf.mxu0
        %v1202 = vadd.f32 0.0, %v1201
        %v1203 = vpop.f32.mrf.mxu0
        %1204 = vdwg.mxu0
        %1205 = vrot.lane.b32.xlu0 %v795, 40
        %v1206 = vpop.permute.xlu0 %1205
        %v1208 = vsel %vm773, %v1183, 0
        %v1211 = vsel %vm846, %v1206, 0
        %1213 = vmatpush.bf16.msra.mxu0 0
        %1214 = vmatpush.bf16.msra.mxu0 0
        %1215 = vmatpush.bf16.msra.mxu0 0
        %1216 = vmatpush.bf16.msra.mxu0 0
        %1217 = vmatpush.bf16.msra.mxu0 0
        %1218 = vmatpush.bf16.msra.mxu0 0
        %1219 = vmatpush.bf16.msra.mxu0 0
        %1220 = vmatpush.bf16.msra.mxu0 %v1211
        %1221 = vmatmul.bf16.gmra.mxu0 %v1208
        %v1222 = vpop.f32.mrf.mxu0
        %v1223 = vadd.f32 0.0, %v1222
        %v1224 = vpop.f32.mrf.mxu0
        %1225 = vdwg.mxu0
        %v1226 = vpack.c.bf16 %v1202, %v1202
        %v1227 = vpack.c.bf16 %v1223, %v1223
        %v1230 = vunpack.c.l.b16 %v884
        %v1231 = vunpack.c.l.b16 %v885
        %v1232 = vpack.c.b16 %v1231, %v1230
        %v1235 = vunpack.c.l.b16 %v998
        %v1236 = vunpack.c.l.b16 %v999
        %v1237 = vpack.c.b16 %v1236, %v1235
        %1238 = vrot.lane.b32.xlu0 %v1237, 8
        %v1239 = vpop.permute.xlu0 %1238
        %v1242 = vunpack.c.l.b16 %v1112
        %v1243 = vunpack.c.l.b16 %v1113
        %v1244 = vpack.c.b16 %v1243, %v1242
        %1245 = vrot.lane.b32.xlu0 %v1244, 16
        %v1246 = vpop.permute.xlu0 %1245
        %v1249 = vunpack.c.l.b16 %v1226
        %v1250 = vunpack.c.l.b16 %v1227
        %v1251 = vpack.c.b16 %v1250, %v1249
        %1252 = vrot.lane.b32.xlu0 %v1251, 24
        %v1253 = vpop.permute.xlu0 %1252
        %v1256 = vsel %vm773, %v1232, %v1239
        %vm1257 = vcmask 130048
        %v1259 = vsel %vm1257, %v1256, %v1246
        %vm1260 = vcmask 195584
        %v1262 = vsel %vm1260, %v1259, %v1253
        %v1263 = vld [vmem:[%s629] sm:$0xf]
        %v1264 = vld [vmem:[%s629 + $0x4] sm:$0xf]
        %v1265 = vld [vmem:[%s629 + $0x8] sm:$0xf]
        %v1266 = vld [vmem:[%s629 + $0xc] sm:$0xf]
        %v1271 = vunpack.c.l.b16 %v1263
        %v1272 = vunpack.c.l.b16 %v1264
        %v1273 = vunpack.c.l.b16 %v1265
        %v1274 = vunpack.c.l.b16 %v1266
        %v1275 = vpack.c.b16 %v1272, %v1271
        %v1276 = vpack.c.b16 %v1274, %v1273
        %v1279 = vsel %vm670, %v1262, 0
        %1281 = vmatpush.bf16.msra.mxu0 0
        %1282 = vmatpush.bf16.msra.mxu0 0
        %1283 = vmatpush.bf16.msra.mxu0 0
        %1284 = vmatpush.bf16.msra.mxu0 0
        %1285 = vmatpush.bf16.msra.mxu0 0
        %1286 = vmatpush.bf16.msra.mxu0 0
        %1287 = vmatpush.bf16.msra.mxu0 %v1276
        %1288 = vmatpush.bf16.msra.mxu0 %v1275
        %1289 = vmatmul.bf16.gmra.mxu0 %v1279
        %v1290 = vpop.f32.mrf.mxu0
        %v1291 = vadd.f32 0.0, %v1290
        %v1292 = vpop.f32.mrf.mxu0
        %v1293 = vadd.f32 0.0, %v1292
        %1294 = vdwg.mxu0
        %v1295 = vadd.f32 %v666, %v1291
        %v1296 = vadd.f32 %v667, %v1293
        %v1297 = vld [vmem:[%s632] sm:$0x1]
        %v1299 = vperm.slane %v1297, 0
        %v1301 = vadd.f32 %v1295, %v1299
        %v1302 = vadd.f32 %v1296, %v1299
        %v1303 = vld [vmem:[%s635] sm:$0x1]
        %v1304 = vld [vmem:[%s638] sm:$0x1]
        %v1305 = vsel %vm670, %v1301, 0.0
        %1306 = vadd.xlane.f32.xlu0 %v1305
        %v1307 = vpop.xlane.xlu0 %1306
        %v1308 = vsel %vm670, %v1302, 0.0
        %1309 = vadd.xlane.f32.xlu0 %v1308
        %v1310 = vpop.xlane.xlu0 %1309
        %v1311 = vmul.f32 %v1307, %v683
        %v1312 = vmul.f32 %v1310, %v683
        %v1313 = vsub.f32 %v1301, %v1311
        %v1314 = vsub.f32 %v1302, %v1312
        %v1315 = vmul.f32 %v1313, %v1313
        %v1316 = vmul.f32 %v1314, %v1314
        %v1317 = vsel %vm670, %v1315, 0.0
        %1318 = vadd.xlane.f32.xlu0 %v1317
        %v1319 = vpop.xlane.xlu0 %1318
        %v1320 = vsel %vm670, %v1316, 0.0
        %1321 = vadd.xlane.f32.xlu0 %v1320
        %v1322 = vpop.xlane.xlu0 %1321
        %v1323 = vmul.f32 %v1319, %v683
        %v1324 = vmul.f32 %v1322, %v683
        %v1325 = vadd.f32 %v1323, 1e-05
        %v1326 = vadd.f32 %v1324, 1e-05
        %v1327 = vrsqrt.pop %v1325
        %v1328 = vmul.f32 %v1327, %v1325
        %v1329 = vmul.f32 %v1328, %v1327
        %v1330 = vmul.f32 0.5, %v1329
        %v1331 = vsub.f32 1.5, %v1330
        %v1332 = vmul.f32 %v1327, %v1331
        %vm1333 = vweird.f32 %v1325
        %vm1334 = vweird.f32 %v1327
        %vm1335 = vmor %vm1333, %vm1334
        %v1336 = vsel %vm1335, %v1327, %v1332
        %v1337 = vrsqrt.pop %v1326
        %v1338 = vmul.f32 %v1337, %v1326
        %v1339 = vmul.f32 %v1338, %v1337
        %v1340 = vmul.f32 0.5, %v1339
        %v1341 = vsub.f32 1.5, %v1340
        %v1342 = vmul.f32 %v1337, %v1341
        %vm1343 = vweird.f32 %v1326
        %vm1344 = vweird.f32 %v1337
        %vm1345 = vmor %vm1343, %vm1344
        %v1346 = vsel %vm1345, %v1337, %v1342
        %v1347 = vmul.f32 %v1313, %v1336
        %v1348 = vmul.f32 %v1314, %v1346
        %v1350 = vperm.slane %v1303, 0
        %v1352 = vmul.f32 %v1347, %v1350
        %v1353 = vmul.f32 %v1348, %v1350
        %v1355 = vperm.slane %v1304, 0
        %v1357 = vadd.f32 %v1352, %v1355
        %v1358 = vadd.f32 %v1353, %v1355
        %v1359 = vpack.c.bf16 %v1358, %v1357
        %v1360 = vld [vmem:[%s643] sm:$0xf]
        %v1361 = vld [vmem:[%s643 + $0x4] sm:$0xf]
        %v1362 = vld [vmem:[%s643 + $0x8] sm:$0xf]
        %v1363 = vld [vmem:[%s643 + $0xc] sm:$0xf]
        %v1364 = vld [vmem:[%s646] sm:$0x1]
        %v1366 = vperm.slane %v1364, 0
        %v1372 = vunpack.c.l.b16 %v1360
        %v1373 = vunpack.c.l.b16 %v1361
        %v1374 = vunpack.c.l.b16 %v1362
        %v1375 = vunpack.c.l.b16 %v1363
        %v1376 = vpack.c.b16 %v1373, %v1372
        %v1377 = vpack.c.b16 %v1375, %v1374
        %v1381 = vsel %vm670, %v1359, 0
        %1383 = vmatpush.bf16.msra.mxu0 0
        %1384 = vmatpush.bf16.msra.mxu0 0
        %1385 = vmatpush.bf16.msra.mxu0 0
        %1386 = vmatpush.bf16.msra.mxu0 0
        %1387 = vmatpush.bf16.msra.mxu0 0
        %1388 = vmatpush.bf16.msra.mxu0 0
        %1389 = vmatpush.bf16.msra.mxu0 %v1377
        %1390 = vmatpush.bf16.msra.mxu0 %v1376
        %1391 = vmatmul.bf16.gmra.mxu0 %v1381
        %v1392 = vpop.f32.mrf.mxu0
        %v1393 = vadd.f32 %v1366, %v1392
        %v1394 = vpop.f32.mrf.mxu0
        %v1395 = vadd.f32 %v1366, %v1394
        %1396 = vdwg.mxu0
        %v1397 = vmul.f32 %v1393, 0.5
        %v1398 = vmul.f32 %v1395, 0.5
        %v1399 = vmul.f32 %v1393, 0.70710677
        %v1400 = vmul.f32 %v1395, 0.70710677
        %v1401 = vand.u32 2147483647, %v1399
        %v1402 = vand.u32 2147483647, %v1400
        %v1403 = vmul.f32 %v1401, 0.3275911
        %v1404 = vmul.f32 %v1402, 0.3275911
        %v1405 = vadd.f32 %v1403, 1.0
        %v1406 = vadd.f32 %v1404, 1.0
        %v1407 = vrcp.pop %v1405
        %v1408 = vmul.f32 %v1405, %v1407
        %v1409 = vsub.f32 1.0, %v1408
        %v1410 = vmul.f32 %v1407, %v1409
        %v1411 = vadd.f32 %v1407, %v1410
        %vm1412 = vweird.f32 %v1405
        %vm1413 = vweird.f32 %v1407
        %vm1414 = vmor %vm1412, %vm1413
        %v1415 = vsel %vm1414, %v1407, %v1411
        %v1416 = vand.u32 2147483647, %v1405
        %vm1417 = vcmp.eq.f32.partialorder %v1416, 8.507059e+37
        %v1418 = vand.u32 %v1405, 2147483648
        %v1419 = vor.u32 1.1754944e-38, %v1418
        %v1420 = vsel %vm1417, %v1419, %v1415
        %v1421 = vmul.f32 1.0, %v1420
        %v1422 = vrcp.pop %v1406
        %v1423 = vmul.f32 %v1406, %v1422
        %v1424 = vsub.f32 1.0, %v1423
        %v1425 = vmul.f32 %v1422, %v1424
        %v1426 = vadd.f32 %v1422, %v1425
        %vm1427 = vweird.f32 %v1406
        %vm1428 = vweird.f32 %v1422
        %vm1429 = vmor %vm1427, %vm1428
        %v1430 = vsel %vm1429, %v1422, %v1426
        %v1431 = vand.u32 2147483647, %v1406
        %vm1432 = vcmp.eq.f32.partialorder %v1431, 8.507059e+37
        %v1433 = vand.u32 %v1406, 2147483648
        %v1434 = vor.u32 1.1754944e-38, %v1433
        %v1435 = vsel %vm1432, %v1434, %v1430
        %v1436 = vmul.f32 1.0, %v1435
        %v1437 = vmul.f32 %v1421, 1.0614054
        %v1438 = vmul.f32 %v1436, 1.0614054
        %v1439 = vadd.f32 %v1437, -1.4531521
        %v1440 = vadd.f32 %v1438, -1.4531521
        %v1441 = vmul.f32 %v1439, %v1421
        %v1442 = vmul.f32 %v1440, %v1436
        %v1443 = vadd.f32 %v1441, 1.4214138
        %v1444 = vadd.f32 %v1442, 1.4214138
        %v1445 = vmul.f32 %v1443, %v1421
        %v1446 = vmul.f32 %v1444, %v1436
        %v1447 = vadd.f32 %v1445, -0.28449672
        %v1448 = vadd.f32 %v1446, -0.28449672
        %v1449 = vmul.f32 %v1447, %v1421
        %v1450 = vmul.f32 %v1448, %v1436
        %v1451 = vadd.f32 %v1449, 0.2548296
        %v1452 = vadd.f32 %v1450, 0.2548296
        %v1453 = vmul.f32 %v1451, %v1421
        %v1454 = vmul.f32 %v1452, %v1436
        %v1455 = vsub.f32 0.0, %v1401
        %v1456 = vsub.f32 0.0, %v1402
        %v1457 = vmul.f32 %v1455, %v1401
        %v1458 = vmul.f32 %v1456, %v1402
        %v1459 = vmul.f32 %v1457, 1.442695
        %v1460 = vpow.pop %v1459
        %v1461 = vmul.f32 %v1458, 1.442695
        %v1462 = vpow.pop %v1461
        %v1463 = vmul.f32 %v1453, %v1460
        %v1464 = vmul.f32 %v1454, %v1462
        %v1465 = vsub.f32 1.0, %v1463
        %v1466 = vsub.f32 1.0, %v1464
        %vm1467 = vcmp.ge.f32.partialorder %v1399, 0.0
        %vm1468 = vcmp.ge.f32.partialorder %v1400, 0.0
        %v1469 = vsub.f32 0.0, %v1465
        %v1470 = vsub.f32 0.0, %v1466
        %v1471 = vsel %vm1467, %v1465, %v1469
        %v1472 = vsel %vm1468, %v1466, %v1470
        %v1473 = vadd.f32 %v1471, 1.0
        %v1474 = vadd.f32 %v1472, 1.0
        %v1475 = vmul.f32 %v1397, %v1473
        %v1476 = vmul.f32 %v1398, %v1474
        %v1477 = vpack.c.bf16 %v1476, %v1475
        %v1478 = vld [vmem:[%s651] sm:$0xf]
        %v1479 = vld [vmem:[%s651 + $0x4] sm:$0xf]
        %v1480 = vld [vmem:[%s651 + $0x8] sm:$0xf]
        %v1481 = vld [vmem:[%s651 + $0xc] sm:$0xf]
        %v1482 = vld [vmem:[%s651 + $0x10] sm:$0xf]
        %v1483 = vld [vmem:[%s651 + $0x14] sm:$0xf]
        %v1484 = vld [vmem:[%s651 + $0x18] sm:$0xf]
        %v1485 = vld [vmem:[%s651 + $0x1c] sm:$0xf]
        %v1486 = vld [vmem:[%s651 + $0x20] sm:$0xf]
        %v1487 = vld [vmem:[%s651 + $0x24] sm:$0xf]
        %v1488 = vld [vmem:[%s651 + $0x28] sm:$0xf]
        %v1489 = vld [vmem:[%s651 + $0x2c] sm:$0xf]
        %v1490 = vld [vmem:[%s651 + $0x30] sm:$0xf]
        %v1491 = vld [vmem:[%s651 + $0x34] sm:$0xf]
        %v1492 = vld [vmem:[%s651 + $0x38] sm:$0xf]
        %v1493 = vld [vmem:[%s651 + $0x3c] sm:$0xf]
        %v1494 = vld [vmem:[%s654] sm:$0x1]
        %v1496 = vperm.slane %v1494, 0
        %v1514 = vunpack.c.l.b16 %v1478
        %v1515 = vunpack.c.l.b16 %v1479
        %v1516 = vunpack.c.l.b16 %v1480
        %v1517 = vunpack.c.l.b16 %v1481
        %v1518 = vunpack.c.l.b16 %v1482
        %v1519 = vunpack.c.l.b16 %v1483
        %v1520 = vunpack.c.l.b16 %v1484
        %v1521 = vunpack.c.l.b16 %v1485
        %v1522 = vunpack.c.l.b16 %v1486
        %v1523 = vunpack.c.l.b16 %v1487
        %v1524 = vunpack.c.l.b16 %v1488
        %v1525 = vunpack.c.l.b16 %v1489
        %v1526 = vunpack.c.l.b16 %v1490
        %v1527 = vunpack.c.l.b16 %v1491
        %v1528 = vunpack.c.l.b16 %v1492
        %v1529 = vunpack.c.l.b16 %v1493
        %v1530 = vpack.c.b16 %v1515, %v1514
        %v1531 = vpack.c.b16 %v1517, %v1516
        %v1532 = vpack.c.b16 %v1519, %v1518
        %v1533 = vpack.c.b16 %v1521, %v1520
        %v1534 = vpack.c.b16 %v1523, %v1522
        %v1535 = vpack.c.b16 %v1525, %v1524
        %v1536 = vpack.c.b16 %v1527, %v1526
        %v1537 = vpack.c.b16 %v1529, %v1528
        %1546 = vmatpush.bf16.msra.mxu0 %v1537
        %1547 = vmatpush.bf16.msra.mxu0 %v1536
        %1548 = vmatpush.bf16.msra.mxu0 %v1535
        %1549 = vmatpush.bf16.msra.mxu0 %v1534
        %1550 = vmatpush.bf16.msra.mxu0 %v1533
        %1551 = vmatpush.bf16.msra.mxu0 %v1532
        %1552 = vmatpush.bf16.msra.mxu0 %v1531
        %1553 = vmatpush.bf16.msra.mxu0 %v1530
        %1554 = vmatmul.bf16.gmra.mxu0 %v1477
        %v1555 = vpop.f32.mrf.mxu0
        %v1556 = vadd.f32 %v1496, %v1555
        %v1557 = vpop.f32.mrf.mxu0
        %v1558 = vadd.f32 %v1496, %v1557
        %1559 = vdwg.mxu0
        %v1560 = vadd.f32 %v1301, %v1556
        %v1561 = vadd.f32 %v1302, %v1558
        %1562 = vst.msk [vmem:[#allocation2] sm:$0xff] %vm670, %v1560
        %1563 = vst.msk [vmem:[#allocation2 + $0x8] sm:$0xff] %vm670, %v1561
        %p1564 = scmp.eq.s32.totalorder %s32, 3
        // Predicated region
        $region85: #{transformer_decoder.1} parent=75 // pred_check
          %p1565 = pneg %p1564
        $region86: #{transformer_decoder.1} parent=75 // pred_check_branch
          %1567 = sbr.rel (%p1565) target = $region88
        $region87: #{transformer_decoder.1} parent=75 // pred_region
          %v1568 = vld [vmem:[%s12] sm:$0x1]
          %v1569 = vld [vmem:[%s13] sm:$0x1]
          %v1570 = vsel %vm670, %v1560, 0.0
          %1571 = vadd.xlane.f32.xlu0 %v1570
          %v1572 = vpop.xlane.xlu0 %1571
          %v1573 = vsel %vm670, %v1561, 0.0
          %1574 = vadd.xlane.f32.xlu0 %v1573
          %v1575 = vpop.xlane.xlu0 %1574
          %v1576 = vmul.f32 %v1572, %v683
          %v1577 = vmul.f32 %v1575, %v683
          %v1578 = vsub.f32 %v1560, %v1576
          %v1579 = vsub.f32 %v1561, %v1577
          %v1580 = vmul.f32 %v1578, %v1578
          %v1581 = vmul.f32 %v1579, %v1579
          %v1582 = vsel %vm670, %v1580, 0.0
          %1583 = vadd.xlane.f32.xlu0 %v1582
          %v1584 = vpop.xlane.xlu0 %1583
          %v1585 = vsel %vm670, %v1581, 0.0
          %1586 = vadd.xlane.f32.xlu0 %v1585
          %v1587 = vpop.xlane.xlu0 %1586
          %v1588 = vmul.f32 %v1584, %v683
          %v1589 = vmul.f32 %v1587, %v683
          %v1590 = vadd.f32 %v1588, 1e-05
          %v1591 = vadd.f32 %v1589, 1e-05
          %v1592 = vrsqrt.pop %v1590
          %v1593 = vmul.f32 %v1592, %v1590
          %v1594 = vmul.f32 %v1593, %v1592
          %v1595 = vmul.f32 0.5, %v1594
          %v1596 = vsub.f32 1.5, %v1595
          %v1597 = vmul.f32 %v1592, %v1596
          %vm1598 = vweird.f32 %v1590
          %vm1599 = vweird.f32 %v1592
          %vm1600 = vmor %vm1598, %vm1599
          %v1601 = vsel %vm1600, %v1592, %v1597
          %v1602 = vrsqrt.pop %v1591
          %v1603 = vmul.f32 %v1602, %v1591
          %v1604 = vmul.f32 %v1603, %v1602
          %v1605 = vmul.f32 0.5, %v1604
          %v1606 = vsub.f32 1.5, %v1605
          %v1607 = vmul.f32 %v1602, %v1606
          %vm1608 = vweird.f32 %v1591
          %vm1609 = vweird.f32 %v1602
          %vm1610 = vmor %vm1608, %vm1609
          %v1611 = vsel %vm1610, %v1602, %v1607
          %v1612 = vmul.f32 %v1578, %v1601
          %v1613 = vmul.f32 %v1579, %v1611
          %v1615 = vperm.slane %v1568, 0
          %v1617 = vmul.f32 %v1612, %v1615
          %v1618 = vmul.f32 %v1613, %v1615
          %v1620 = vperm.slane %v1569, 0
          %v1622 = vadd.f32 %v1617, %v1620
          %v1623 = vadd.f32 %v1618, %v1620
          %1624 = vst.msk [vmem:[#allocation6] sm:$0xff] %vm670, %v1622
          %1625 = vst.msk [vmem:[#allocation6 + $0x8] sm:$0xff] %vm670, %v1623
        $region88: #{transformer_decoder.1} parent=75 // pred_fallthru
          _
        // Predicated region
        $region89: #{transformer_decoder.1} parent=75 // pred_check
          %p1626 = pneg %p411
        $region90: #{transformer_decoder.1} parent=75 // pred_check_branch
          %1628 = sbr.rel (%p1626) target = $region92
        $region91: #{transformer_decoder.1} parent=75 // pred_region
          %s1629 = smul.u32 2, %s31
          %1631 = vsyncadd [#allocation5], 0
          %s1632 = smul.addr %s1629, 8
          %s1633 = scalar_lea.hbm %s14, %s1632
          %s1634 = sshll.u32 [#allocation6], 4
          %s1635 = int_to_ptr.vmem [resolvable:$true] %s1634
          %s1636 = sshll.u32 %s1633, 4
          %s1637 = int_to_ptr.hbm [resolvable:$true] %s1636
          %1642 = dma.vmem_to_hbm [thread:$0]  %s1635, 256, %s1637, [#allocation5], 128, 128, 8
        $region92: #{transformer_decoder.1} parent=75 // pred_fallthru
          _
        // Predicated region
        $region93: #{transformer_decoder.1} parent=75 // pred_check
          %p1643 = pneg %p411
        $region94: #{transformer_decoder.1} parent=75 // pred_check_branch
          %1645 = sbr.rel (%p1643) target = $region96
        $region95: #{transformer_decoder.1} parent=75 // pred_region
          %1647 = dma.done [#allocation5], 256
        $region96: #{transformer_decoder.1} parent=75 // pred_fallthru
          _
      $region76: #{transformer_decoder.1} parent=5 // pred_fallthru
        _
      %p1648 = scmp.le.s32.totalorder 2, %s22
      // Predicated region
      $region97: #{transformer_decoder.1} parent=5 // pred_check
        %p1649 = pneg %p1648
      $region98: #{transformer_decoder.1} parent=5 // pred_check_branch
        %1651 = sbr.rel (%p1649) target = $region100
      $region99: #{transformer_decoder.1} parent=5 // pred_region
        %s1652 = ssub.s32 %s22, 2
      $region100: #{transformer_decoder.1} parent=5 // pred_fallthru
        _
    $region6: #{transformer_decoder.1} parent=1 // loop_footer
      %s26 = sadd.s32 1, %s22
    $region7: #{transformer_decoder.1} parent=1 // loop_footer_branch
      %21 = sbr.rel target = $region3
    $region8: #{transformer_decoder.1} parent=1 // loop_exit
      _
    %1653 = vsyncpa [#allocation4], 1
    %s1654 = scalar_lea.sflag [#allocation4], 1
    %1655 = vsyncpa %s1654, 1
    %1656 = vsyncpa [#allocation5], 1
    %s1657 = scalar_lea.sflag [#allocation5], 1
    %1658 = vsyncpa %s1657, 1

</llo_original>
